<compile_context>
chip_gen: v7x
topology: tpu7x:2x2x1
jax: 0.10.0
libtpu: 0.0.40
codegen_flags: <defaults>
</compile_context>

<pallas_src>
import jax
import jax.numpy as jnp
from jax.experimental import pallas as pl
from jax.experimental.pallas import tpu as pltpu


def _make_rnn_kernel(T, B, D, H, num_layers, activation):
    if activation == "tanh":
        act = jnp.tanh                                 # EUP slot (off-VALU)
    elif activation == "relu":
        act = lambda v: jnp.maximum(v, 0.0)
    else:
        raise ValueError("Invalid activation function")

    def kernel(*refs):
        # refs = [x (T*B, D),
        #         (w_ih, w_hh, b) * num_layers,      # b = b_ih + b_hh (pre-summed)
        #         w_fc (H, O), b_fc (1, O),
        #         out (B, O),
        #         xw_scratch (T*B, H)]
        x_ref = refs[0]
        layer_refs = refs[1:1 + 3 * num_layers]
        w_fc_ref = refs[1 + 3 * num_layers]
        b_fc_ref = refs[2 + 3 * num_layers]
        out_ref = refs[3 + 3 * num_layers]
        xw_ref = refs[4 + 3 * num_layers]

        # ---- Hoisted layer-0 input projection: one batched matmul over all T.
        w_ih0 = layer_refs[0][...]
        b0 = layer_refs[2][...]
        xw_ref[...] = (
            jnp.dot(x_ref[...], w_ih0, preferred_element_type=jnp.float32) + b0
        )

        # ---- Hoist all loop-invariant weight loads out of the time loop.
        w_hh = [layer_refs[3 * l + 1][...] for l in range(num_layers)]
        w_ih_deep = [layer_refs[3 * l][...] for l in range(1, num_layers)]
        b_deep = [layer_refs[3 * l + 2][...] for l in range(1, num_layers)]

        h_init = tuple(jnp.zeros((B, H), jnp.float32) for _ in range(num_layers))

        def step(t, hs):
            # Layer 0: only an (B,H)@(H,H) matmul sits on the serial path.
            xw_t = xw_ref[pl.ds(t * B, B), :]                      # (B, H)
            h0 = act(xw_t + jnp.dot(hs[0], w_hh[0],
                                    preferred_element_type=jnp.float32))
            new_hs = [h0]
            inp = h0
            for l in range(1, num_layers):
                h_l = act(
                    jnp.dot(inp, w_ih_deep[l - 1],
                            preferred_element_type=jnp.float32)
                    + jnp.dot(hs[l], w_hh[l],
                              preferred_element_type=jnp.float32)
                    + b_deep[l - 1]
                )
                new_hs.append(h_l)
                inp = h_l
            return tuple(new_hs)

        # Fully unrolled (T is small & static) -> static slice offsets, no
        # loop-carried live-range pessimism, full scheduler visibility.
        hs = jax.lax.fori_loop(0, T, step, h_init, unroll=True)

        # Final linear layer on the last layer's hidden state at the last step.
        y = (jnp.dot(hs[num_layers - 1], w_fc_ref[...],
                     preferred_element_type=jnp.float32) + b_fc_ref[...])
        out_ref[...] = y.astype(out_ref.dtype)

    return kernel


def rnn_net_forward(x_btd, params, *, num_layers, hidden_dim, output_dim,
                    activation="tanh"):
    """x_btd: (B, T, input_dim) float32.  Returns (B, output_dim)."""
    B, T, D = x_btd.shape
    H, O = hidden_dim, output_dim

    # Time-major, flattened to (T*B, D) so the layer-0 input projection is a
    # single MXU-friendly matmul (hoisted off the serial recurrence).
    x2d = jnp.transpose(x_btd, (1, 0, 2)).reshape(T * B, D)

    weight_args = []
    for layer in range(num_layers):
        w_ih, b_ih, w_hh, b_hh = params["cells"][layer]
        weight_args += [w_ih, w_hh, b_ih + b_hh]     # biases pre-summed on host
    w_fc, b_fc = params["fc"]
    weight_args += [w_fc, b_fc]

    kernel = _make_rnn_kernel(T, B, D, H, num_layers, activation)

    n_in = 1 + len(weight_args)
    vmem_spec = pl.BlockSpec(memory_space=pltpu.MemorySpace.VMEM)

    out = pl.pallas_call(
        kernel,
        out_shape=jax.ShapeDtypeStruct((B, O), jnp.float32),
        in_specs=[vmem_spec] * n_in,
        out_specs=vmem_spec,
        scratch_shapes=[pltpu.VMEM((T * B, H), jnp.float32)],
    )(x2d, *weight_args)
    return out


def init_params(key, input_dim, hidden_dim, num_layers, output_dim):
    """Deterministic synthetic init (uniform, PyTorch-style ranges)."""
    params = {"cells": [], "fc": None}
    k = 1.0 / jnp.sqrt(hidden_dim)
    keys = jax.random.split(key, 4 * num_layers + 2)
    idx = 0
    for layer in range(num_layers):
        in_dim = input_dim if layer == 0 else hidden_dim
        w_ih = jax.random.uniform(keys[idx], (in_dim, hidden_dim), jnp.float32, -k, k); idx += 1
        b_ih = jax.random.uniform(keys[idx], (1, hidden_dim), jnp.float32, -k, k); idx += 1
        w_hh = jax.random.uniform(keys[idx], (hidden_dim, hidden_dim), jnp.float32, -k, k); idx += 1
        b_hh = jax.random.uniform(keys[idx], (1, hidden_dim), jnp.float32, -k, k); idx += 1
        params["cells"].append((w_ih, b_ih, w_hh, b_hh))
    kf = 1.0 / jnp.sqrt(hidden_dim)
    w_fc = jax.random.uniform(keys[idx], (hidden_dim, output_dim), jnp.float32, -kf, kf); idx += 1
    b_fc = jax.random.uniform(keys[idx], (1, output_dim), jnp.float32, -kf, kf)
    params["fc"] = (w_fc, b_fc)
    return params


def rnn_net_reference(x_btd, params, *, num_layers, hidden_dim, activation="tanh"):
    """Pure-JAX reference mirroring the PyTorch forward (for verification)."""
    act = jnp.tanh if activation == "tanh" else (lambda v: jnp.maximum(v, 0.0))
    B, T, _ = x_btd.shape
    hx = [jnp.zeros((B, hidden_dim), jnp.float32) for _ in range(num_layers)]
    last = None
    for t in range(T):
        for layer in range(num_layers):
            w_ih, b_ih, w_hh, b_hh = params["cells"][layer]
            inp = x_btd[:, t, :] if layer == 0 else hx[layer - 1]
            hx[layer] = act(inp @ w_ih + b_ih + hx[layer] @ w_hh + b_hh)
        last = hx[num_layers - 1]
    w_fc, b_fc = params["fc"]
    # PyTorch does .squeeze() before fc; with B > 1 it is a no-op.
    return last @ w_fc + b_fc


if __name__ == "__main__":
    # Small shapes consistent with the module's forward.
    B, T = 2, 8
    input_dim, hidden_dim, num_layers, output_dim = 16, 32, 2, 8

    key = jax.random.PRNGKey(0)
    kx, kp = jax.random.split(key)
    x = jax.random.normal(kx, (B, T, input_dim), jnp.float32)
    params = init_params(kp, input_dim, hidden_dim, num_layers, output_dim)

    out = rnn_net_forward(
        x, params,
        num_layers=num_layers, hidden_dim=hidden_dim,
        output_dim=output_dim, activation="tanh",
    )
    out = jax.block_until_ready(out)

    ref = rnn_net_reference(
        x, params, num_layers=num_layers, hidden_dim=hidden_dim, activation="tanh"
    )
    assert out.shape == (B, output_dim)
    assert jnp.allclose(out, ref, atol=1e-5, rtol=1e-5), "mismatch vs reference"

    print("KERNEL_OK")
</pallas_src>

<mosaic_0001>
module attributes {stable_mosaic.version = 11 : i64} {
  func.func @kernel(%arg0: memref<16x16xf32, #tpu.memory_space<vmem>>, %arg1: memref<16x32xf32, #tpu.memory_space<vmem>>, %arg2: memref<32x32xf32, #tpu.memory_space<vmem>>, %arg3: memref<1x32xf32, #tpu.memory_space<vmem>>, %arg4: memref<32x32xf32, #tpu.memory_space<vmem>>, %arg5: memref<32x32xf32, #tpu.memory_space<vmem>>, %arg6: memref<1x32xf32, #tpu.memory_space<vmem>>, %arg7: memref<32x8xf32, #tpu.memory_space<vmem>>, %arg8: memref<1x8xf32, #tpu.memory_space<vmem>>, %arg9: memref<2x8xf32, #tpu.memory_space<vmem>>, %arg10: memref<16x32xf32, #tpu.memory_space<vmem>>) attributes {dimension_semantics = [], scalar_prefetch = 0 : i64, scratch_operands = 1 : i64, tpu.core_type = #tpu.core_type<tc>} {
    %c0 = arith.constant 0 : index
    %c0_0 = arith.constant 0 : index
    %0 = vector.load %arg1[%c0, %c0_0] : memref<16x32xf32, #tpu.memory_space<vmem>>, vector<16x32xf32>
    %c0_1 = arith.constant 0 : index
    %c0_2 = arith.constant 0 : index
    %1 = vector.load %arg3[%c0_1, %c0_2] : memref<1x32xf32, #tpu.memory_space<vmem>>, vector<1x32xf32>
    %c0_3 = arith.constant 0 : index
    %c0_4 = arith.constant 0 : index
    %2 = vector.load %arg0[%c0_3, %c0_4] : memref<16x16xf32, #tpu.memory_space<vmem>>, vector<16x16xf32>
    %cst = arith.constant dense<0.000000e+00> : vector<16x32xf32>
    %3 = tpu.matmul %2, %0, %cst {dimension_numbers = #tpu.dot_dimension_numbers<[1], [0], [0], [1], [0, 0, 1, 1], [], []>} : vector<16x16xf32>, vector<16x32xf32>, vector<16x32xf32> -> vector<16x32xf32>
    %4 = vector.broadcast %1 : vector<1x32xf32> to vector<16x32xf32>
    %5 = arith.addf %3, %4 : vector<16x32xf32>
    %c0_5 = arith.constant 0 : index
    %c0_6 = arith.constant 0 : index
    %6 = vector.load %arg10[%c0_5, %c0_6] : memref<16x32xf32, #tpu.memory_space<vmem>>, vector<16x32xf32>
    tpu.vector_store %arg10[%c0_5, %c0_6], %5 {strides = array<i32>} : memref<16x32xf32, #tpu.memory_space<vmem>>, vector<16x32xf32>,
    %c0_7 = arith.constant 0 : index
    %c0_8 = arith.constant 0 : index
    %7 = vector.load %arg2[%c0_7, %c0_8] : memref<32x32xf32, #tpu.memory_space<vmem>>, vector<32x32xf32>
    %c0_9 = arith.constant 0 : index
    %c0_10 = arith.constant 0 : index
    %8 = vector.load %arg5[%c0_9, %c0_10] : memref<32x32xf32, #tpu.memory_space<vmem>>, vector<32x32xf32>
    %c0_11 = arith.constant 0 : index
    %c0_12 = arith.constant 0 : index
    %9 = vector.load %arg4[%c0_11, %c0_12] : memref<32x32xf32, #tpu.memory_space<vmem>>, vector<32x32xf32>
    %c0_13 = arith.constant 0 : index
    %c0_14 = arith.constant 0 : index
    %10 = vector.load %arg6[%c0_13, %c0_14] : memref<1x32xf32, #tpu.memory_space<vmem>>, vector<1x32xf32>
    %cst_15 = arith.constant 0.000000e+00 : f32
    %11 = vector.broadcast %cst_15 : f32 to vector<2x32xf32>
    %cst_16 = arith.constant 0.000000e+00 : f32
    %12 = vector.broadcast %cst_16 : f32 to vector<2x32xf32>
    %c0_i32 = arith.constant 0 : i32
    %c2_i32 = arith.constant 2 : i32
    %13 = arith.muli %c0_i32, %c2_i32 : i32
    %14 = arith.index_cast %13 : i32 to index
    %c0_17 = arith.constant 0 : index
    %15 = vector.load %arg10[%14, %c0_17] : memref<16x32xf32, #tpu.memory_space<vmem>>, vector<2x32xf32>
    %cst_18 = arith.constant dense<0.000000e+00> : vector<2x32xf32>
    %16 = tpu.matmul %11, %7, %cst_18 {dimension_numbers = #tpu.dot_dimension_numbers<[1], [0], [0], [1], [0, 0, 1, 1], [], []>} : vector<2x32xf32>, vector<32x32xf32>, vector<2x32xf32> -> vector<2x32xf32>
    %17 = arith.addf %15, %16 : vector<2x32xf32>
    %18 = math.tanh %17 : vector<2x32xf32>
    %cst_19 = arith.constant dense<0.000000e+00> : vector<2x32xf32>
    %19 = tpu.matmul %18, %9, %cst_19 {dimension_numbers = #tpu.dot_dimension_numbers<[1], [0], [0], [1], [0, 0, 1, 1], [], []>} : vector<2x32xf32>, vector<32x32xf32>, vector<2x32xf32> -> vector<2x32xf32>
    %cst_20 = arith.constant dense<0.000000e+00> : vector<2x32xf32>
    %20 = tpu.matmul %12, %8, %cst_20 {dimension_numbers = #tpu.dot_dimension_numbers<[1], [0], [0], [1], [0, 0, 1, 1], [], []>} : vector<2x32xf32>, vector<32x32xf32>, vector<2x32xf32> -> vector<2x32xf32>
    %21 = arith.addf %19, %20 : vector<2x32xf32>
    %22 = vector.broadcast %10 : vector<1x32xf32> to vector<2x32xf32>
    %23 = arith.addf %21, %22 : vector<2x32xf32>
    %24 = math.tanh %23 : vector<2x32xf32>
    %c1_i32 = arith.constant 1 : i32
    %c2_i32_21 = arith.constant 2 : i32
    %25 = arith.muli %c1_i32, %c2_i32_21 : i32
    %26 = arith.index_cast %25 : i32 to index
    %c0_22 = arith.constant 0 : index
    %27 = vector.load %arg10[%26, %c0_22] : memref<16x32xf32, #tpu.memory_space<vmem>>, vector<2x32xf32>
    %cst_23 = arith.constant dense<0.000000e+00> : vector<2x32xf32>
    %28 = tpu.matmul %18, %7, %cst_23 {dimension_numbers = #tpu.dot_dimension_numbers<[1], [0], [0], [1], [0, 0, 1, 1], [], []>} : vector<2x32xf32>, vector<32x32xf32>, vector<2x32xf32> -> vector<2x32xf32>
    %29 = arith.addf %27, %28 : vector<2x32xf32>
    %30 = math.tanh %29 : vector<2x32xf32>
    %cst_24 = arith.constant dense<0.000000e+00> : vector<2x32xf32>
    %31 = tpu.matmul %30, %9, %cst_24 {dimension_numbers = #tpu.dot_dimension_numbers<[1], [0], [0], [1], [0, 0, 1, 1], [], []>} : vector<2x32xf32>, vector<32x32xf32>, vector<2x32xf32> -> vector<2x32xf32>
    %cst_25 = arith.constant dense<0.000000e+00> : vector<2x32xf32>
    %32 = tpu.matmul %24, %8, %cst_25 {dimension_numbers = #tpu.dot_dimension_numbers<[1], [0], [0], [1], [0, 0, 1, 1], [], []>} : vector<2x32xf32>, vector<32x32xf32>, vector<2x32xf32> -> vector<2x32xf32>
    %33 = arith.addf %31, %32 : vector<2x32xf32>
    %34 = vector.broadcast %10 : vector<1x32xf32> to vector<2x32xf32>
    %35 = arith.addf %33, %34 : vector<2x32xf32>
    %36 = math.tanh %35 : vector<2x32xf32>
    %c2_i32_26 = arith.constant 2 : i32
    %c2_i32_27 = arith.constant 2 : i32
    %37 = arith.muli %c2_i32_26, %c2_i32_27 : i32
    %38 = arith.index_cast %37 : i32 to index
    %c0_28 = arith.constant 0 : index
    %39 = vector.load %arg10[%38, %c0_28] : memref<16x32xf32, #tpu.memory_space<vmem>>, vector<2x32xf32>
    %cst_29 = arith.constant dense<0.000000e+00> : vector<2x32xf32>
    %40 = tpu.matmul %30, %7, %cst_29 {dimension_numbers = #tpu.dot_dimension_numbers<[1], [0], [0], [1], [0, 0, 1, 1], [], []>} : vector<2x32xf32>, vector<32x32xf32>, vector<2x32xf32> -> vector<2x32xf32>
    %41 = arith.addf %39, %40 : vector<2x32xf32>
    %42 = math.tanh %41 : vector<2x32xf32>
    %cst_30 = arith.constant dense<0.000000e+00> : vector<2x32xf32>
    %43 = tpu.matmul %42, %9, %cst_30 {dimension_numbers = #tpu.dot_dimension_numbers<[1], [0], [0], [1], [0, 0, 1, 1], [], []>} : vector<2x32xf32>, vector<32x32xf32>, vector<2x32xf32> -> vector<2x32xf32>
    %cst_31 = arith.constant dense<0.000000e+00> : vector<2x32xf32>
    %44 = tpu.matmul %36, %8, %cst_31 {dimension_numbers = #tpu.dot_dimension_numbers<[1], [0], [0], [1], [0, 0, 1, 1], [], []>} : vector<2x32xf32>, vector<32x32xf32>, vector<2x32xf32> -> vector<2x32xf32>
    %45 = arith.addf %43, %44 : vector<2x32xf32>
    %46 = vector.broadcast %10 : vector<1x32xf32> to vector<2x32xf32>
    %47 = arith.addf %45, %46 : vector<2x32xf32>
    %48 = math.tanh %47 : vector<2x32xf32>
    %c3_i32 = arith.constant 3 : i32
    %c2_i32_32 = arith.constant 2 : i32
    %49 = arith.muli %c3_i32, %c2_i32_32 : i32
    %50 = arith.index_cast %49 : i32 to index
    %c0_33 = arith.constant 0 : index
    %51 = vector.load %arg10[%50, %c0_33] : memref<16x32xf32, #tpu.memory_space<vmem>>, vector<2x32xf32>
    %cst_34 = arith.constant dense<0.000000e+00> : vector<2x32xf32>
    %52 = tpu.matmul %42, %7, %cst_34 {dimension_numbers = #tpu.dot_dimension_numbers<[1], [0], [0], [1], [0, 0, 1, 1], [], []>} : vector<2x32xf32>, vector<32x32xf32>, vector<2x32xf32> -> vector<2x32xf32>
    %53 = arith.addf %51, %52 : vector<2x32xf32>
    %54 = math.tanh %53 : vector<2x32xf32>
    %cst_35 = arith.constant dense<0.000000e+00> : vector<2x32xf32>
    %55 = tpu.matmul %54, %9, %cst_35 {dimension_numbers = #tpu.dot_dimension_numbers<[1], [0], [0], [1], [0, 0, 1, 1], [], []>} : vector<2x32xf32>, vector<32x32xf32>, vector<2x32xf32> -> vector<2x32xf32>
    %cst_36 = arith.constant dense<0.000000e+00> : vector<2x32xf32>
    %56 = tpu.matmul %48, %8, %cst_36 {dimension_numbers = #tpu.dot_dimension_numbers<[1], [0], [0], [1], [0, 0, 1, 1], [], []>} : vector<2x32xf32>, vector<32x32xf32>, vector<2x32xf32> -> vector<2x32xf32>
    %57 = arith.addf %55, %56 : vector<2x32xf32>
    %58 = vector.broadcast %10 : vector<1x32xf32> to vector<2x32xf32>
    %59 = arith.addf %57, %58 : vector<2x32xf32>
    %60 = math.tanh %59 : vector<2x32xf32>
    %c4_i32 = arith.constant 4 : i32
    %c2_i32_37 = arith.constant 2 : i32
    %61 = arith.muli %c4_i32, %c2_i32_37 : i32
    %62 = arith.index_cast %61 : i32 to index
    %c0_38 = arith.constant 0 : index
    %63 = vector.load %arg10[%62, %c0_38] : memref<16x32xf32, #tpu.memory_space<vmem>>, vector<2x32xf32>
    %cst_39 = arith.constant dense<0.000000e+00> : vector<2x32xf32>
    %64 = tpu.matmul %54, %7, %cst_39 {dimension_numbers = #tpu.dot_dimension_numbers<[1], [0], [0], [1], [0, 0, 1, 1], [], []>} : vector<2x32xf32>, vector<32x32xf32>, vector<2x32xf32> -> vector<2x32xf32>
    %65 = arith.addf %63, %64 : vector<2x32xf32>
    %66 = math.tanh %65 : vector<2x32xf32>
    %cst_40 = arith.constant dense<0.000000e+00> : vector<2x32xf32>
    %67 = tpu.matmul %66, %9, %cst_40 {dimension_numbers = #tpu.dot_dimension_numbers<[1], [0], [0], [1], [0, 0, 1, 1], [], []>} : vector<2x32xf32>, vector<32x32xf32>, vector<2x32xf32> -> vector<2x32xf32>
    %cst_41 = arith.constant dense<0.000000e+00> : vector<2x32xf32>
    %68 = tpu.matmul %60, %8, %cst_41 {dimension_numbers = #tpu.dot_dimension_numbers<[1], [0], [0], [1], [0, 0, 1, 1], [], []>} : vector<2x32xf32>, vector<32x32xf32>, vector<2x32xf32> -> vector<2x32xf32>
    %69 = arith.addf %67, %68 : vector<2x32xf32>
    %70 = vector.broadcast %10 : vector<1x32xf32> to vector<2x32xf32>
    %71 = arith.addf %69, %70 : vector<2x32xf32>
    %72 = math.tanh %71 : vector<2x32xf32>
    %c5_i32 = arith.constant 5 : i32
    %c2_i32_42 = arith.constant 2 : i32
    %73 = arith.muli %c5_i32, %c2_i32_42 : i32
    %74 = arith.index_cast %73 : i32 to index
    %c0_43 = arith.constant 0 : index
    %75 = vector.load %arg10[%74, %c0_43] : memref<16x32xf32, #tpu.memory_space<vmem>>, vector<2x32xf32>
    %cst_44 = arith.constant dense<0.000000e+00> : vector<2x32xf32>
    %76 = tpu.matmul %66, %7, %cst_44 {dimension_numbers = #tpu.dot_dimension_numbers<[1], [0], [0], [1], [0, 0, 1, 1], [], []>} : vector<2x32xf32>, vector<32x32xf32>, vector<2x32xf32> -> vector<2x32xf32>
    %77 = arith.addf %75, %76 : vector<2x32xf32>
    %78 = math.tanh %77 : vector<2x32xf32>
    %cst_45 = arith.constant dense<0.000000e+00> : vector<2x32xf32>
    %79 = tpu.matmul %78, %9, %cst_45 {dimension_numbers = #tpu.dot_dimension_numbers<[1], [0], [0], [1], [0, 0, 1, 1], [], []>} : vector<2x32xf32>, vector<32x32xf32>, vector<2x32xf32> -> vector<2x32xf32>
    %cst_46 = arith.constant dense<0.000000e+00> : vector<2x32xf32>
    %80 = tpu.matmul %72, %8, %cst_46 {dimension_numbers = #tpu.dot_dimension_numbers<[1], [0], [0], [1], [0, 0, 1, 1], [], []>} : vector<2x32xf32>, vector<32x32xf32>, vector<2x32xf32> -> vector<2x32xf32>
    %81 = arith.addf %79, %80 : vector<2x32xf32>
    %82 = vector.broadcast %10 : vector<1x32xf32> to vector<2x32xf32>
    %83 = arith.addf %81, %82 : vector<2x32xf32>
    %84 = math.tanh %83 : vector<2x32xf32>
    %c6_i32 = arith.constant 6 : i32
    %c2_i32_47 = arith.constant 2 : i32
    %85 = arith.muli %c6_i32, %c2_i32_47 : i32
    %86 = arith.index_cast %85 : i32 to index
    %c0_48 = arith.constant 0 : index
    %87 = vector.load %arg10[%86, %c0_48] : memref<16x32xf32, #tpu.memory_space<vmem>>, vector<2x32xf32>
    %cst_49 = arith.constant dense<0.000000e+00> : vector<2x32xf32>
    %88 = tpu.matmul %78, %7, %cst_49 {dimension_numbers = #tpu.dot_dimension_numbers<[1], [0], [0], [1], [0, 0, 1, 1], [], []>} : vector<2x32xf32>, vector<32x32xf32>, vector<2x32xf32> -> vector<2x32xf32>
    %89 = arith.addf %87, %88 : vector<2x32xf32>
    %90 = math.tanh %89 : vector<2x32xf32>
    %cst_50 = arith.constant dense<0.000000e+00> : vector<2x32xf32>
    %91 = tpu.matmul %90, %9, %cst_50 {dimension_numbers = #tpu.dot_dimension_numbers<[1], [0], [0], [1], [0, 0, 1, 1], [], []>} : vector<2x32xf32>, vector<32x32xf32>, vector<2x32xf32> -> vector<2x32xf32>
    %cst_51 = arith.constant dense<0.000000e+00> : vector<2x32xf32>
    %92 = tpu.matmul %84, %8, %cst_51 {dimension_numbers = #tpu.dot_dimension_numbers<[1], [0], [0], [1], [0, 0, 1, 1], [], []>} : vector<2x32xf32>, vector<32x32xf32>, vector<2x32xf32> -> vector<2x32xf32>
    %93 = arith.addf %91, %92 : vector<2x32xf32>
    %94 = vector.broadcast %10 : vector<1x32xf32> to vector<2x32xf32>
    %95 = arith.addf %93, %94 : vector<2x32xf32>
    %96 = math.tanh %95 : vector<2x32xf32>
    %c7_i32 = arith.constant 7 : i32
    %c2_i32_52 = arith.constant 2 : i32
    %97 = arith.muli %c7_i32, %c2_i32_52 : i32
    %98 = arith.index_cast %97 : i32 to index
    %c0_53 = arith.constant 0 : index
    %99 = vector.load %arg10[%98, %c0_53] : memref<16x32xf32, #tpu.memory_space<vmem>>, vector<2x32xf32>
    %cst_54 = arith.constant dense<0.000000e+00> : vector<2x32xf32>
    %100 = tpu.matmul %90, %7, %cst_54 {dimension_numbers = #tpu.dot_dimension_numbers<[1], [0], [0], [1], [0, 0, 1, 1], [], []>} : vector<2x32xf32>, vector<32x32xf32>, vector<2x32xf32> -> vector<2x32xf32>
    %101 = arith.addf %99, %100 : vector<2x32xf32>
    %102 = math.tanh %101 : vector<2x32xf32>
    %cst_55 = arith.constant dense<0.000000e+00> : vector<2x32xf32>
    %103 = tpu.matmul %102, %9, %cst_55 {dimension_numbers = #tpu.dot_dimension_numbers<[1], [0], [0], [1], [0, 0, 1, 1], [], []>} : vector<2x32xf32>, vector<32x32xf32>, vector<2x32xf32> -> vector<2x32xf32>
    %cst_56 = arith.constant dense<0.000000e+00> : vector<2x32xf32>
    %104 = tpu.matmul %96, %8, %cst_56 {dimension_numbers = #tpu.dot_dimension_numbers<[1], [0], [0], [1], [0, 0, 1, 1], [], []>} : vector<2x32xf32>, vector<32x32xf32>, vector<2x32xf32> -> vector<2x32xf32>
    %105 = arith.addf %103, %104 : vector<2x32xf32>
    %106 = vector.broadcast %10 : vector<1x32xf32> to vector<2x32xf32>
    %107 = arith.addf %105, %106 : vector<2x32xf32>
    %108 = math.tanh %107 : vector<2x32xf32>
    %c8_i32 = arith.constant 8 : i32
    %c0_57 = arith.constant 0 : index
    %c0_58 = arith.constant 0 : index
    %109 = vector.load %arg7[%c0_57, %c0_58] : memref<32x8xf32, #tpu.memory_space<vmem>>, vector<32x8xf32>
    %cst_59 = arith.constant dense<0.000000e+00> : vector<2x8xf32>
    %110 = tpu.matmul %108, %109, %cst_59 {dimension_numbers = #tpu.dot_dimension_numbers<[1], [0], [0], [1], [0, 0, 1, 1], [], []>} : vector<2x32xf32>, vector<32x8xf32>, vector<2x8xf32> -> vector<2x8xf32>
    %c0_60 = arith.constant 0 : index
    %c0_61 = arith.constant 0 : index
    %111 = vector.load %arg8[%c0_60, %c0_61] : memref<1x8xf32, #tpu.memory_space<vmem>>, vector<1x8xf32>
    %112 = vector.broadcast %111 : vector<1x8xf32> to vector<2x8xf32>
    %113 = arith.addf %110, %112 : vector<2x8xf32>
    %c0_62 = arith.constant 0 : index
    %c0_63 = arith.constant 0 : index
    %114 = vector.load %arg9[%c0_62, %c0_63] : memref<2x8xf32, #tpu.memory_space<vmem>>, vector<2x8xf32>
    tpu.vector_store %arg9[%c0_62, %c0_63], %113 {strides = array<i32>} : memref<2x8xf32, #tpu.memory_space<vmem>>, vector<2x8xf32>,
    return
  }
}

</mosaic_0001>

<llo_original>
// kernel: tpu_custom_call.1
$region0: #{tpu_custom_call.1}
  #allocation0 [shape = 'u32[]', space=smem, size = 0x4, offset = 0x4, fixed_abs, tag = 'smem constant byte address 0x4 - core index']
  #allocation1 [shape = 'u32[144,128]{1,0:T(1,128)}', space=vmem, size = 0x12000, scoped, tag = 'internal scratch']
  #allocation2 [shape = 'f32[16,32]{1,0:T(8,128)}', space=vmem, size = 0x2000, scoped, tag = 'scratch operand']
  %s0 = inlined_call_operand.hbm [shape: f32[16,16], index: 0, kind: input, shape index: {}]
  %s1 = inlined_call_operand.hbm [shape: f32[16,32], index: 1, kind: input, shape index: {}]
  %s2 = inlined_call_operand.vmem [shape: f32[32,32], index: 2, kind: input, shape index: {}]
  %s3 = inlined_call_operand.vmem [shape: f32[1,32], index: 3, kind: input, shape index: {}]
  %s4 = inlined_call_operand.hbm [shape: f32[32,32], index: 4, kind: input, shape index: {}]
  %s5 = inlined_call_operand.hbm [shape: f32[32,32], index: 5, kind: input, shape index: {}]
  %s6 = inlined_call_operand.vmem [shape: f32[1,32], index: 6, kind: input, shape index: {}]
  %s7 = inlined_call_operand.vmem [shape: f32[32,8], index: 7, kind: input, shape index: {}]
  %s8 = inlined_call_operand.vmem [shape: f32[1,8], index: 8, kind: input, shape index: {}]
  %s9 = inlined_call_operand.hbm [shape: f32[2,8], index: 9, kind: output, shape index: {}]
  %s10 = sld [smem:[#allocation0]]
  $region62: #{tpu_custom_call.1} parent=0
    _
  %s12 = ssub.s32 1, %s10
  %s13 = scalar_select 0, %s12, %s10
  $region1: #{tpu_custom_call.1} parent=0
    #allocation3 [shape = 'u8[8192]{0}', space=vmem, size = 0x2000, scoped, tag = 'input window, operand 0, single buffered']
    #allocation4 [shape = 's32[1]{0}', space=sflag, size = 0x4, scoped, tag = 'scoped memory for tpu_custom_call.1']
    #allocation5 [shape = 's32[1]{0}', space=sflag, size = 0x4, scoped, tag = 'scoped memory for tpu_custom_call.1']
    #allocation6 [shape = 'u8[8192]{0}', space=vmem, size = 0x2000, scoped, tag = 'input window, operand 1, single buffered']
    #allocation7 [shape = 's32[1]{0}', space=sflag, size = 0x4, scoped, tag = 'scoped memory for tpu_custom_call.1']
    #allocation8 [shape = 'u8[16384]{0}', space=vmem, size = 0x4000, scoped, tag = 'input window, operand 4, single buffered']
    #allocation9 [shape = 'u8[16384]{0}', space=vmem, size = 0x4000, scoped, tag = 'input window, operand 5, single buffered']
    #allocation10 [shape = 's32[1]{0}', space=sflag, size = 0x4, scoped, tag = 'scoped memory for tpu_custom_call.1']
    #allocation11 [shape = 'u8[1024]{0}', space=vmem, size = 0x400, scoped, tag = 'output window, operand 0, single buffered']
    %14 = vsyncpa [#allocation4], 0
    %15 = vsyncpa [#allocation7], 0
    %16 = vsyncpa [#allocation10], 0
    %17 = vsyncpa [#allocation5], 0
    // Predicated region
    $region2: #{tpu_custom_call.1} parent=1 // pred_check
      _
    $region3: #{tpu_custom_call.1} parent=1 // pred_check_branch
      %19 = sbr.rel (0) target = $region5
    $region4: #{tpu_custom_call.1} parent=1 // pred_region
      %s21 = ssub.s32 256, 256
      %22 = vsyncadd [#allocation4], %s21
      %s23 = sshll.u32 [#allocation3], 4
      %s24 = int_to_ptr.vmem [resolvable:$true] %s23
      %29 = dma.hbm_to_vmem [thread:$0]  %s0, 256, %s24, [#allocation4], 128, 128, 8
    $region5: #{tpu_custom_call.1} parent=1 // pred_fallthru
      _
    // Predicated region
    $region6: #{tpu_custom_call.1} parent=1 // pred_check
      _
    $region7: #{tpu_custom_call.1} parent=1 // pred_check_branch
      %31 = sbr.rel (0) target = $region9
    $region8: #{tpu_custom_call.1} parent=1 // pred_region
      %s33 = ssub.s32 256, 256
      %34 = vsyncadd [#allocation7], %s33
      %s35 = sshll.u32 [#allocation6], 4
      %s36 = int_to_ptr.vmem [resolvable:$true] %s35
      %41 = dma.hbm_to_vmem [thread:$0]  %s1, 256, %s36, [#allocation7], 128, 128, 8
    $region9: #{tpu_custom_call.1} parent=1 // pred_fallthru
      _
    // Predicated region
    $region10: #{tpu_custom_call.1} parent=1 // pred_check
      _
    $region11: #{tpu_custom_call.1} parent=1 // pred_check_branch
      %43 = sbr.rel (0) target = $region13
    $region12: #{tpu_custom_call.1} parent=1 // pred_region
      _
    $region13: #{tpu_custom_call.1} parent=1 // pred_fallthru
      _
    // Predicated region
    $region14: #{tpu_custom_call.1} parent=1 // pred_check
      _
    $region15: #{tpu_custom_call.1} parent=1 // pred_check_branch
      %45 = sbr.rel (0) target = $region17
    $region16: #{tpu_custom_call.1} parent=1 // pred_region
      _
    $region17: #{tpu_custom_call.1} parent=1 // pred_fallthru
      _
    // Predicated region
    $region18: #{tpu_custom_call.1} parent=1 // pred_check
      _
    $region19: #{tpu_custom_call.1} parent=1 // pred_check_branch
      %47 = sbr.rel (0) target = $region21
    $region20: #{tpu_custom_call.1} parent=1 // pred_region
      %s49 = ssub.s32 512, 512
      %50 = vsyncadd [#allocation7], %s49
      %s51 = sshll.u32 [#allocation8], 4
      %s52 = int_to_ptr.vmem [resolvable:$true] %s51
      %57 = dma.hbm_to_vmem [thread:$0]  %s4, 512, %s52, [#allocation7], 128, 128, 8
    $region21: #{tpu_custom_call.1} parent=1 // pred_fallthru
      _
    // Predicated region
    $region22: #{tpu_custom_call.1} parent=1 // pred_check
      _
    $region23: #{tpu_custom_call.1} parent=1 // pred_check_branch
      %59 = sbr.rel (0) target = $region25
    $region24: #{tpu_custom_call.1} parent=1 // pred_region
      %s61 = ssub.s32 512, 512
      %62 = vsyncadd [#allocation10], %s61
      %s63 = sshll.u32 [#allocation9], 4
      %s64 = int_to_ptr.vmem [resolvable:$true] %s63
      %69 = dma.hbm_to_vmem [thread:$0]  %s5, 512, %s64, [#allocation10], 128, 128, 8
    $region25: #{tpu_custom_call.1} parent=1 // pred_fallthru
      _
    // Predicated region
    $region26: #{tpu_custom_call.1} parent=1 // pred_check
      _
    $region27: #{tpu_custom_call.1} parent=1 // pred_check_branch
      %71 = sbr.rel (0) target = $region29
    $region28: #{tpu_custom_call.1} parent=1 // pred_region
      _
    $region29: #{tpu_custom_call.1} parent=1 // pred_fallthru
      _
    // Predicated region
    $region30: #{tpu_custom_call.1} parent=1 // pred_check
      _
    $region31: #{tpu_custom_call.1} parent=1 // pred_check_branch
      %73 = sbr.rel (0) target = $region33
    $region32: #{tpu_custom_call.1} parent=1 // pred_region
      _
    $region33: #{tpu_custom_call.1} parent=1 // pred_fallthru
      _
    // Predicated region
    $region34: #{tpu_custom_call.1} parent=1 // pred_check
      _
    $region35: #{tpu_custom_call.1} parent=1 // pred_check_branch
      %75 = sbr.rel (0) target = $region37
    $region36: #{tpu_custom_call.1} parent=1 // pred_region
      _
    $region37: #{tpu_custom_call.1} parent=1 // pred_fallthru
      _
    // Predicated region
    $region38: #{tpu_custom_call.1} parent=1 // pred_check
      _
    $region39: #{tpu_custom_call.1} parent=1 // pred_check_branch
      %77 = sbr.rel (0) target = $region41
    $region40: #{tpu_custom_call.1} parent=1 // pred_region
      %78 = dma.done [#allocation4], 256
    $region41: #{tpu_custom_call.1} parent=1 // pred_fallthru
      _
    // Predicated region
    $region42: #{tpu_custom_call.1} parent=1 // pred_check
      _
    $region43: #{tpu_custom_call.1} parent=1 // pred_check_branch
      %80 = sbr.rel (0) target = $region45
    $region44: #{tpu_custom_call.1} parent=1 // pred_region
      %81 = dma.done [#allocation7], 256
    $region45: #{tpu_custom_call.1} parent=1 // pred_fallthru
      _
    // Predicated region
    $region46: #{tpu_custom_call.1} parent=1 // pred_check
      _
    $region47: #{tpu_custom_call.1} parent=1 // pred_check_branch
      %83 = sbr.rel (0) target = $region49
    $region48: #{tpu_custom_call.1} parent=1 // pred_region
      %84 = dma.done [#allocation7], 512
    $region49: #{tpu_custom_call.1} parent=1 // pred_fallthru
      _
    // Predicated region
    $region50: #{tpu_custom_call.1} parent=1 // pred_check
      _
    $region51: #{tpu_custom_call.1} parent=1 // pred_check_branch
      %86 = sbr.rel (0) target = $region53
    $region52: #{tpu_custom_call.1} parent=1 // pred_region
      %87 = dma.done [#allocation10], 512
    $region53: #{tpu_custom_call.1} parent=1 // pred_fallthru
      _
    %v88 = vld [vmem:[#allocation6] sm:$0xff]
    %v89 = vld [vmem:[#allocation6 + $0x8] sm:$0xff]
    %v90 = vld [vmem:[%s3] sm:$0x1]
    %v91 = vld [vmem:[#allocation3] sm:$0xff]
    %v92 = vld [vmem:[#allocation3 + $0x8] sm:$0xff]
    %v94 = vlaneseq
    %v95 = vshrl.u32 %v94, 7
    %v96 = vsub.s32 0, %v95
    %v97 = vrot.slane %v90, %v96
    %vm99 = vcmask 130048
    %v101 = vsel %vm99, %v91, 0
    %v104 = vsel %vm99, %v92, 0
    %106 = vmatprep.subr.mxu0 0.0
    %107 = vmatpush1.msra.mxu0 %v88
    %108 = vmatprep.subr.mxu0 0.0
    %109 = vmatpush1.msra.mxu0 %v89
    %110 = vmatprep.subr.mxu0 0.0
    %111 = vmatpush1.msra.mxu0 0.0
    %112 = vmatprep.subr.mxu0 0.0
    %113 = vmatpush1.msra.mxu0 0.0
    %114 = vmatprep.subr.mxu0 0.0
    %115 = vmatpush1.msra.mxu0 0.0
    %116 = vmatprep.subr.mxu0 0.0
    %117 = vmatpush1.msra.mxu0 0.0
    %118 = vmatprep.subr.mxu0 0.0
    %119 = vmatpush1.msra.mxu0 0.0
    %120 = vmatprep.subr.mxu0 0.0
    %121 = vmatpush1.msra.mxu0 0.0
    %122 = vmatprep.subr.mxu0 0.0
    %123 = vmatpush1.msra.mxu0 0.0
    %124 = vmatprep.subr.mxu0 0.0
    %125 = vmatpush1.msra.mxu0 0.0
    %126 = vmatprep.subr.mxu0 0.0
    %127 = vmatpush1.msra.mxu0 0.0
    %128 = vmatprep.subr.mxu0 0.0
    %129 = vmatpush1.msra.mxu0 0.0
    %130 = vmatprep.subr.mxu0 0.0
    %131 = vmatpush1.msra.mxu0 0.0
    %132 = vmatprep.subr.mxu0 0.0
    %133 = vmatpush1.msra.mxu0 0.0
    %134 = vmatprep.subr.mxu0 0.0
    %135 = vmatpush1.msra.mxu0 0.0
    %136 = vmatprep.subr.mxu0 0.0
    %137 = vmatpush1.msra.mxu0 0.0
    %138 = vmatprep.subr.mxu0 0.0
    %139 = vmatpush1.msra.mxu0 0.0
    %140 = vmatprep.subr.mxu0 0.0
    %141 = vmatpush1.msra.mxu0 0.0
    %142 = vmatprep.subr.mxu0 0.0
    %143 = vmatpush1.msra.mxu0 0.0
    %144 = vmatprep.subr.mxu0 0.0
    %145 = vmatpush1.msra.mxu0 0.0
    %146 = vmatprep.subr.mxu0 0.0
    %147 = vmatpush1.msra.mxu0 0.0
    %148 = vmatprep.subr.mxu0 0.0
    %149 = vmatpush1.msra.mxu0 0.0
    %150 = vmatprep.subr.mxu0 0.0
    %151 = vmatpush1.msra.mxu0 0.0
    %152 = vmatprep.subr.mxu0 0.0
    %153 = vmatpush1.msra.mxu0 0.0
    %154 = vmatprep.subr.mxu0 0.0
    %155 = vmatpush1.msra.mxu0 0.0
    %156 = vmatprep.subr.mxu0 0.0
    %157 = vmatpush1.msra.mxu0 0.0
    %158 = vmatprep.subr.mxu0 0.0
    %159 = vmatpush1.msra.mxu0 0.0
    %160 = vmatprep.subr.mxu0 0.0
    %161 = vmatpush1.msra.mxu0 0.0
    %162 = vmatprep.subr.mxu0 0.0
    %163 = vmatpush1.msra.mxu0 0.0
    %164 = vmatprep.subr.mxu0 0.0
    %165 = vmatpush1.msra.mxu0 0.0
    %166 = vmatprep.subr.mxu0 0.0
    %167 = vmatpush1.msra.mxu0 0.0
    %168 = vmatprep.subr.mxu0 0.0
    %169 = vmatpush1.msra.mxu0 0.0
    %170 = vmatprep.mubr.f32.mxu0 0.0
    %171 = vmatmul.mubr.f32.gmra.mrb[0].mxu0 %v101
    %v172 = vpop.f32.mrb[0].mxu0
    %v173 = vadd.f32 %v97, %v172
    %v174 = vpop.f32.mrb[0].mxu0
    %175 = vmatprep.mubr.f32.mxu0 0.0
    %176 = vmatmul.mubr.f32.gmra.mrb[0].mxu0 %v104
    %v177 = vpop.f32.mrb[0].mxu0
    %v178 = vadd.f32 %v97, %v177
    %v179 = vpop.f32.mrb[0].mxu0
    %180 = vdwg.mxu0
    %vm181 = vcmask 261120
    %182 = vst.msk [vmem:[#allocation2] sm:$0xff] %vm181, %v173
    %183 = vst.msk [vmem:[#allocation2 + $0x8] sm:$0xff] %vm181, %v178
    %v184 = vld [vmem:[%s2] sm:$0xff]
    %v185 = vld [vmem:[%s2 + $0x8] sm:$0xff]
    %v186 = vld [vmem:[%s2 + $0x10] sm:$0xff]
    %v187 = vld [vmem:[%s2 + $0x18] sm:$0xff]
    %v188 = vld [vmem:[#allocation9] sm:$0xff]
    %v189 = vld [vmem:[#allocation9 + $0x8] sm:$0xff]
    %v190 = vld [vmem:[#allocation9 + $0x10] sm:$0xff]
    %v191 = vld [vmem:[#allocation9 + $0x18] sm:$0xff]
    %v192 = vld [vmem:[#allocation8] sm:$0xff]
    %v193 = vld [vmem:[#allocation8 + $0x8] sm:$0xff]
    %v194 = vld [vmem:[#allocation8 + $0x10] sm:$0xff]
    %v195 = vld [vmem:[#allocation8 + $0x18] sm:$0xff]
    %v196 = vld [vmem:[%s6] sm:$0x1]
    %v197 = vld [vmem:[#allocation2] sm:$0x3]
    %v199 = vsel %vm181, 0.0, 0
    %201 = vmatprep.subr.mxu0 0.0
    %202 = vmatpush1.msra.mxu0 %v184
    %203 = vmatprep.subr.mxu0 0.0
    %204 = vmatpush1.msra.mxu0 %v185
    %205 = vmatprep.subr.mxu0 0.0
    %206 = vmatpush1.msra.mxu0 %v186
    %207 = vmatprep.subr.mxu0 0.0
    %208 = vmatpush1.msra.mxu0 %v187
    %209 = vmatprep.subr.mxu0 0.0
    %210 = vmatpush1.msra.mxu0 0.0
    %211 = vmatprep.subr.mxu0 0.0
    %212 = vmatpush1.msra.mxu0 0.0
    %213 = vmatprep.subr.mxu0 0.0
    %214 = vmatpush1.msra.mxu0 0.0
    %215 = vmatprep.subr.mxu0 0.0
    %216 = vmatpush1.msra.mxu0 0.0
    %217 = vmatprep.subr.mxu0 0.0
    %218 = vmatpush1.msra.mxu0 0.0
    %219 = vmatprep.subr.mxu0 0.0
    %220 = vmatpush1.msra.mxu0 0.0
    %221 = vmatprep.subr.mxu0 0.0
    %222 = vmatpush1.msra.mxu0 0.0
    %223 = vmatprep.subr.mxu0 0.0
    %224 = vmatpush1.msra.mxu0 0.0
    %225 = vmatprep.subr.mxu0 0.0
    %226 = vmatpush1.msra.mxu0 0.0
    %227 = vmatprep.subr.mxu0 0.0
    %228 = vmatpush1.msra.mxu0 0.0
    %229 = vmatprep.subr.mxu0 0.0
    %230 = vmatpush1.msra.mxu0 0.0
    %231 = vmatprep.subr.mxu0 0.0
    %232 = vmatpush1.msra.mxu0 0.0
    %233 = vmatprep.subr.mxu0 0.0
    %234 = vmatpush1.msra.mxu0 0.0
    %235 = vmatprep.subr.mxu0 0.0
    %236 = vmatpush1.msra.mxu0 0.0
    %237 = vmatprep.subr.mxu0 0.0
    %238 = vmatpush1.msra.mxu0 0.0
    %239 = vmatprep.subr.mxu0 0.0
    %240 = vmatpush1.msra.mxu0 0.0
    %241 = vmatprep.subr.mxu0 0.0
    %242 = vmatpush1.msra.mxu0 0.0
    %243 = vmatprep.subr.mxu0 0.0
    %244 = vmatpush1.msra.mxu0 0.0
    %245 = vmatprep.subr.mxu0 0.0
    %246 = vmatpush1.msra.mxu0 0.0
    %247 = vmatprep.subr.mxu0 0.0
    %248 = vmatpush1.msra.mxu0 0.0
    %249 = vmatprep.subr.mxu0 0.0
    %250 = vmatpush1.msra.mxu0 0.0
    %251 = vmatprep.subr.mxu0 0.0
    %252 = vmatpush1.msra.mxu0 0.0
    %253 = vmatprep.subr.mxu0 0.0
    %254 = vmatpush1.msra.mxu0 0.0
    %255 = vmatprep.subr.mxu0 0.0
    %256 = vmatpush1.msra.mxu0 0.0
    %257 = vmatprep.subr.mxu0 0.0
    %258 = vmatpush1.msra.mxu0 0.0
    %259 = vmatprep.subr.mxu0 0.0
    %260 = vmatpush1.msra.mxu0 0.0
    %261 = vmatprep.subr.mxu0 0.0
    %262 = vmatpush1.msra.mxu0 0.0
    %263 = vmatprep.subr.mxu0 0.0
    %264 = vmatpush1.msra.mxu0 0.0
    %265 = vmatprep.mubr.f32.mxu0 0.0
    %266 = vmatmul.mubr.f32.gmra.mrb[0].mxu0 %v199
    %v267 = vpop.f32.mrb[0].mxu0
    %v268 = vadd.f32 0.0, %v267
    %v269 = vpop.f32.mrb[0].mxu0
    %270 = vdwg.mxu0
    %v271 = vadd.f32 %v197, %v268
    %v272 = vtanh.pop %v271
    %273 = vmatprep.subr.mxu0 0.0
    %274 = vmatpush1.msra.mxu0 %v188
    %275 = vmatprep.subr.mxu0 0.0
    %276 = vmatpush1.msra.mxu0 %v189
    %277 = vmatprep.subr.mxu0 0.0
    %278 = vmatpush1.msra.mxu0 %v190
    %279 = vmatprep.subr.mxu0 0.0
    %280 = vmatpush1.msra.mxu0 %v191
    %281 = vmatprep.subr.mxu0 0.0
    %282 = vmatpush1.msra.mxu0 0.0
    %283 = vmatprep.subr.mxu0 0.0
    %284 = vmatpush1.msra.mxu0 0.0
    %285 = vmatprep.subr.mxu0 0.0
    %286 = vmatpush1.msra.mxu0 0.0
    %287 = vmatprep.subr.mxu0 0.0
    %288 = vmatpush1.msra.mxu0 0.0
    %289 = vmatprep.subr.mxu0 0.0
    %290 = vmatpush1.msra.mxu0 0.0
    %291 = vmatprep.subr.mxu0 0.0
    %292 = vmatpush1.msra.mxu0 0.0
    %293 = vmatprep.subr.mxu0 0.0
    %294 = vmatpush1.msra.mxu0 0.0
    %295 = vmatprep.subr.mxu0 0.0
    %296 = vmatpush1.msra.mxu0 0.0
    %297 = vmatprep.subr.mxu0 0.0
    %298 = vmatpush1.msra.mxu0 0.0
    %299 = vmatprep.subr.mxu0 0.0
    %300 = vmatpush1.msra.mxu0 0.0
    %301 = vmatprep.subr.mxu0 0.0
    %302 = vmatpush1.msra.mxu0 0.0
    %303 = vmatprep.subr.mxu0 0.0
    %304 = vmatpush1.msra.mxu0 0.0
    %305 = vmatprep.subr.mxu0 0.0
    %306 = vmatpush1.msra.mxu0 0.0
    %307 = vmatprep.subr.mxu0 0.0
    %308 = vmatpush1.msra.mxu0 0.0
    %309 = vmatprep.subr.mxu0 0.0
    %310 = vmatpush1.msra.mxu0 0.0
    %311 = vmatprep.subr.mxu0 0.0
    %312 = vmatpush1.msra.mxu0 0.0
    %313 = vmatprep.subr.mxu0 0.0
    %314 = vmatpush1.msra.mxu0 0.0
    %315 = vmatprep.subr.mxu0 0.0
    %316 = vmatpush1.msra.mxu0 0.0
    %317 = vmatprep.subr.mxu0 0.0
    %318 = vmatpush1.msra.mxu0 0.0
    %319 = vmatprep.subr.mxu0 0.0
    %320 = vmatpush1.msra.mxu0 0.0
    %321 = vmatprep.subr.mxu0 0.0
    %322 = vmatpush1.msra.mxu0 0.0
    %323 = vmatprep.subr.mxu0 0.0
    %324 = vmatpush1.msra.mxu0 0.0
    %325 = vmatprep.subr.mxu0 0.0
    %326 = vmatpush1.msra.mxu0 0.0
    %327 = vmatprep.subr.mxu0 0.0
    %328 = vmatpush1.msra.mxu0 0.0
    %329 = vmatprep.subr.mxu0 0.0
    %330 = vmatpush1.msra.mxu0 0.0
    %331 = vmatprep.subr.mxu0 0.0
    %332 = vmatpush1.msra.mxu0 0.0
    %333 = vmatprep.subr.mxu0 0.0
    %334 = vmatpush1.msra.mxu0 0.0
    %335 = vmatprep.subr.mxu0 0.0
    %336 = vmatpush1.msra.mxu0 0.0
    %337 = vmatprep.mubr.f32.mxu0 0.0
    %338 = vmatmul.mubr.f32.gmra.mrb[0].mxu0 %v199
    %v339 = vpop.f32.mrb[0].mxu0
    %v340 = vadd.f32 0.0, %v339
    %v341 = vpop.f32.mrb[0].mxu0
    %342 = vdwg.mxu0
    %v344 = vsel %vm181, %v272, 0
    %346 = vmatprep.subr.mxu0 0.0
    %347 = vmatpush1.msra.mxu0 %v192
    %348 = vmatprep.subr.mxu0 0.0
    %349 = vmatpush1.msra.mxu0 %v193
    %350 = vmatprep.subr.mxu0 0.0
    %351 = vmatpush1.msra.mxu0 %v194
    %352 = vmatprep.subr.mxu0 0.0
    %353 = vmatpush1.msra.mxu0 %v195
    %354 = vmatprep.subr.mxu0 0.0
    %355 = vmatpush1.msra.mxu0 0.0
    %356 = vmatprep.subr.mxu0 0.0
    %357 = vmatpush1.msra.mxu0 0.0
    %358 = vmatprep.subr.mxu0 0.0
    %359 = vmatpush1.msra.mxu0 0.0
    %360 = vmatprep.subr.mxu0 0.0
    %361 = vmatpush1.msra.mxu0 0.0
    %362 = vmatprep.subr.mxu0 0.0
    %363 = vmatpush1.msra.mxu0 0.0
    %364 = vmatprep.subr.mxu0 0.0
    %365 = vmatpush1.msra.mxu0 0.0
    %366 = vmatprep.subr.mxu0 0.0
    %367 = vmatpush1.msra.mxu0 0.0
    %368 = vmatprep.subr.mxu0 0.0
    %369 = vmatpush1.msra.mxu0 0.0
    %370 = vmatprep.subr.mxu0 0.0
    %371 = vmatpush1.msra.mxu0 0.0
    %372 = vmatprep.subr.mxu0 0.0
    %373 = vmatpush1.msra.mxu0 0.0
    %374 = vmatprep.subr.mxu0 0.0
    %375 = vmatpush1.msra.mxu0 0.0
    %376 = vmatprep.subr.mxu0 0.0
    %377 = vmatpush1.msra.mxu0 0.0
    %378 = vmatprep.subr.mxu0 0.0
    %379 = vmatpush1.msra.mxu0 0.0
    %380 = vmatprep.subr.mxu0 0.0
    %381 = vmatpush1.msra.mxu0 0.0
    %382 = vmatprep.subr.mxu0 0.0
    %383 = vmatpush1.msra.mxu0 0.0
    %384 = vmatprep.subr.mxu0 0.0
    %385 = vmatpush1.msra.mxu0 0.0
    %386 = vmatprep.subr.mxu0 0.0
    %387 = vmatpush1.msra.mxu0 0.0
    %388 = vmatprep.subr.mxu0 0.0
    %389 = vmatpush1.msra.mxu0 0.0
    %390 = vmatprep.subr.mxu0 0.0
    %391 = vmatpush1.msra.mxu0 0.0
    %392 = vmatprep.subr.mxu0 0.0
    %393 = vmatpush1.msra.mxu0 0.0
    %394 = vmatprep.subr.mxu0 0.0
    %395 = vmatpush1.msra.mxu0 0.0
    %396 = vmatprep.subr.mxu0 0.0
    %397 = vmatpush1.msra.mxu0 0.0
    %398 = vmatprep.subr.mxu0 0.0
    %399 = vmatpush1.msra.mxu0 0.0
    %400 = vmatprep.subr.mxu0 0.0
    %401 = vmatpush1.msra.mxu0 0.0
    %402 = vmatprep.subr.mxu0 0.0
    %403 = vmatpush1.msra.mxu0 0.0
    %404 = vmatprep.subr.mxu0 0.0
    %405 = vmatpush1.msra.mxu0 0.0
    %406 = vmatprep.subr.mxu0 0.0
    %407 = vmatpush1.msra.mxu0 0.0
    %408 = vmatprep.subr.mxu0 0.0
    %409 = vmatpush1.msra.mxu0 0.0
    %410 = vmatprep.mubr.f32.mxu0 0.0
    %411 = vmatmul.mubr.f32.gmra.mrb[0].mxu0 %v344
    %v412 = vpop.f32.mrb[0].mxu0
    %v413 = vadd.f32 %v340, %v412
    %v414 = vpop.f32.mrb[0].mxu0
    %415 = vdwg.mxu0
    %v417 = vlaneseq
    %v418 = vshrl.u32 %v417, 7
    %v419 = vsub.s32 0, %v418
    %v420 = vrot.slane %v196, %v419
    %v422 = vadd.f32 %v413, %v420
    %v423 = vtanh.pop %v422
    %v424 = vld [vmem:[#allocation2 + $0x2] sm:$0x3]
    %425 = vmatprep.subr.mxu0 0.0
    %426 = vmatpush1.msra.mxu0 %v184
    %427 = vmatprep.subr.mxu0 0.0
    %428 = vmatpush1.msra.mxu0 %v185
    %429 = vmatprep.subr.mxu0 0.0
    %430 = vmatpush1.msra.mxu0 %v186
    %431 = vmatprep.subr.mxu0 0.0
    %432 = vmatpush1.msra.mxu0 %v187
    %433 = vmatprep.subr.mxu0 0.0
    %434 = vmatpush1.msra.mxu0 0.0
    %435 = vmatprep.subr.mxu0 0.0
    %436 = vmatpush1.msra.mxu0 0.0
    %437 = vmatprep.subr.mxu0 0.0
    %438 = vmatpush1.msra.mxu0 0.0
    %439 = vmatprep.subr.mxu0 0.0
    %440 = vmatpush1.msra.mxu0 0.0
    %441 = vmatprep.subr.mxu0 0.0
    %442 = vmatpush1.msra.mxu0 0.0
    %443 = vmatprep.subr.mxu0 0.0
    %444 = vmatpush1.msra.mxu0 0.0
    %445 = vmatprep.subr.mxu0 0.0
    %446 = vmatpush1.msra.mxu0 0.0
    %447 = vmatprep.subr.mxu0 0.0
    %448 = vmatpush1.msra.mxu0 0.0
    %449 = vmatprep.subr.mxu0 0.0
    %450 = vmatpush1.msra.mxu0 0.0
    %451 = vmatprep.subr.mxu0 0.0
    %452 = vmatpush1.msra.mxu0 0.0
    %453 = vmatprep.subr.mxu0 0.0
    %454 = vmatpush1.msra.mxu0 0.0
    %455 = vmatprep.subr.mxu0 0.0
    %456 = vmatpush1.msra.mxu0 0.0
    %457 = vmatprep.subr.mxu0 0.0
    %458 = vmatpush1.msra.mxu0 0.0
    %459 = vmatprep.subr.mxu0 0.0
    %460 = vmatpush1.msra.mxu0 0.0
    %461 = vmatprep.subr.mxu0 0.0
    %462 = vmatpush1.msra.mxu0 0.0
    %463 = vmatprep.subr.mxu0 0.0
    %464 = vmatpush1.msra.mxu0 0.0
    %465 = vmatprep.subr.mxu0 0.0
    %466 = vmatpush1.msra.mxu0 0.0
    %467 = vmatprep.subr.mxu0 0.0
    %468 = vmatpush1.msra.mxu0 0.0
    %469 = vmatprep.subr.mxu0 0.0
    %470 = vmatpush1.msra.mxu0 0.0
    %471 = vmatprep.subr.mxu0 0.0
    %472 = vmatpush1.msra.mxu0 0.0
    %473 = vmatprep.subr.mxu0 0.0
    %474 = vmatpush1.msra.mxu0 0.0
    %475 = vmatprep.subr.mxu0 0.0
    %476 = vmatpush1.msra.mxu0 0.0
    %477 = vmatprep.subr.mxu0 0.0
    %478 = vmatpush1.msra.mxu0 0.0
    %479 = vmatprep.subr.mxu0 0.0
    %480 = vmatpush1.msra.mxu0 0.0
    %481 = vmatprep.subr.mxu0 0.0
    %482 = vmatpush1.msra.mxu0 0.0
    %483 = vmatprep.subr.mxu0 0.0
    %484 = vmatpush1.msra.mxu0 0.0
    %485 = vmatprep.subr.mxu0 0.0
    %486 = vmatpush1.msra.mxu0 0.0
    %487 = vmatprep.subr.mxu0 0.0
    %488 = vmatpush1.msra.mxu0 0.0
    %489 = vmatprep.mubr.f32.mxu0 0.0
    %490 = vmatmul.mubr.f32.gmra.mrb[0].mxu0 %v344
    %v491 = vpop.f32.mrb[0].mxu0
    %v492 = vadd.f32 0.0, %v491
    %v493 = vpop.f32.mrb[0].mxu0
    %494 = vdwg.mxu0
    %v495 = vadd.f32 %v424, %v492
    %v496 = vtanh.pop %v495
    %v498 = vsel %vm181, %v423, 0
    %500 = vmatprep.subr.mxu0 0.0
    %501 = vmatpush1.msra.mxu0 %v188
    %502 = vmatprep.subr.mxu0 0.0
    %503 = vmatpush1.msra.mxu0 %v189
    %504 = vmatprep.subr.mxu0 0.0
    %505 = vmatpush1.msra.mxu0 %v190
    %506 = vmatprep.subr.mxu0 0.0
    %507 = vmatpush1.msra.mxu0 %v191
    %508 = vmatprep.subr.mxu0 0.0
    %509 = vmatpush1.msra.mxu0 0.0
    %510 = vmatprep.subr.mxu0 0.0
    %511 = vmatpush1.msra.mxu0 0.0
    %512 = vmatprep.subr.mxu0 0.0
    %513 = vmatpush1.msra.mxu0 0.0
    %514 = vmatprep.subr.mxu0 0.0
    %515 = vmatpush1.msra.mxu0 0.0
    %516 = vmatprep.subr.mxu0 0.0
    %517 = vmatpush1.msra.mxu0 0.0
    %518 = vmatprep.subr.mxu0 0.0
    %519 = vmatpush1.msra.mxu0 0.0
    %520 = vmatprep.subr.mxu0 0.0
    %521 = vmatpush1.msra.mxu0 0.0
    %522 = vmatprep.subr.mxu0 0.0
    %523 = vmatpush1.msra.mxu0 0.0
    %524 = vmatprep.subr.mxu0 0.0
    %525 = vmatpush1.msra.mxu0 0.0
    %526 = vmatprep.subr.mxu0 0.0
    %527 = vmatpush1.msra.mxu0 0.0
    %528 = vmatprep.subr.mxu0 0.0
    %529 = vmatpush1.msra.mxu0 0.0
    %530 = vmatprep.subr.mxu0 0.0
    %531 = vmatpush1.msra.mxu0 0.0
    %532 = vmatprep.subr.mxu0 0.0
    %533 = vmatpush1.msra.mxu0 0.0
    %534 = vmatprep.subr.mxu0 0.0
    %535 = vmatpush1.msra.mxu0 0.0
    %536 = vmatprep.subr.mxu0 0.0
    %537 = vmatpush1.msra.mxu0 0.0
    %538 = vmatprep.subr.mxu0 0.0
    %539 = vmatpush1.msra.mxu0 0.0
    %540 = vmatprep.subr.mxu0 0.0
    %541 = vmatpush1.msra.mxu0 0.0
    %542 = vmatprep.subr.mxu0 0.0
    %543 = vmatpush1.msra.mxu0 0.0
    %544 = vmatprep.subr.mxu0 0.0
    %545 = vmatpush1.msra.mxu0 0.0
    %546 = vmatprep.subr.mxu0 0.0
    %547 = vmatpush1.msra.mxu0 0.0
    %548 = vmatprep.subr.mxu0 0.0
    %549 = vmatpush1.msra.mxu0 0.0
    %550 = vmatprep.subr.mxu0 0.0
    %551 = vmatpush1.msra.mxu0 0.0
    %552 = vmatprep.subr.mxu0 0.0
    %553 = vmatpush1.msra.mxu0 0.0
    %554 = vmatprep.subr.mxu0 0.0
    %555 = vmatpush1.msra.mxu0 0.0
    %556 = vmatprep.subr.mxu0 0.0
    %557 = vmatpush1.msra.mxu0 0.0
    %558 = vmatprep.subr.mxu0 0.0
    %559 = vmatpush1.msra.mxu0 0.0
    %560 = vmatprep.subr.mxu0 0.0
    %561 = vmatpush1.msra.mxu0 0.0
    %562 = vmatprep.subr.mxu0 0.0
    %563 = vmatpush1.msra.mxu0 0.0
    %564 = vmatprep.mubr.f32.mxu0 0.0
    %565 = vmatmul.mubr.f32.gmra.mrb[0].mxu0 %v498
    %v566 = vpop.f32.mrb[0].mxu0
    %v567 = vadd.f32 0.0, %v566
    %v568 = vpop.f32.mrb[0].mxu0
    %569 = vdwg.mxu0
    %v571 = vsel %vm181, %v496, 0
    %573 = vmatprep.subr.mxu0 0.0
    %574 = vmatpush1.msra.mxu0 %v192
    %575 = vmatprep.subr.mxu0 0.0
    %576 = vmatpush1.msra.mxu0 %v193
    %577 = vmatprep.subr.mxu0 0.0
    %578 = vmatpush1.msra.mxu0 %v194
    %579 = vmatprep.subr.mxu0 0.0
    %580 = vmatpush1.msra.mxu0 %v195
    %581 = vmatprep.subr.mxu0 0.0
    %582 = vmatpush1.msra.mxu0 0.0
    %583 = vmatprep.subr.mxu0 0.0
    %584 = vmatpush1.msra.mxu0 0.0
    %585 = vmatprep.subr.mxu0 0.0
    %586 = vmatpush1.msra.mxu0 0.0
    %587 = vmatprep.subr.mxu0 0.0
    %588 = vmatpush1.msra.mxu0 0.0
    %589 = vmatprep.subr.mxu0 0.0
    %590 = vmatpush1.msra.mxu0 0.0
    %591 = vmatprep.subr.mxu0 0.0
    %592 = vmatpush1.msra.mxu0 0.0
    %593 = vmatprep.subr.mxu0 0.0
    %594 = vmatpush1.msra.mxu0 0.0
    %595 = vmatprep.subr.mxu0 0.0
    %596 = vmatpush1.msra.mxu0 0.0
    %597 = vmatprep.subr.mxu0 0.0
    %598 = vmatpush1.msra.mxu0 0.0
    %599 = vmatprep.subr.mxu0 0.0
    %600 = vmatpush1.msra.mxu0 0.0
    %601 = vmatprep.subr.mxu0 0.0
    %602 = vmatpush1.msra.mxu0 0.0
    %603 = vmatprep.subr.mxu0 0.0
    %604 = vmatpush1.msra.mxu0 0.0
    %605 = vmatprep.subr.mxu0 0.0
    %606 = vmatpush1.msra.mxu0 0.0
    %607 = vmatprep.subr.mxu0 0.0
    %608 = vmatpush1.msra.mxu0 0.0
    %609 = vmatprep.subr.mxu0 0.0
    %610 = vmatpush1.msra.mxu0 0.0
    %611 = vmatprep.subr.mxu0 0.0
    %612 = vmatpush1.msra.mxu0 0.0
    %613 = vmatprep.subr.mxu0 0.0
    %614 = vmatpush1.msra.mxu0 0.0
    %615 = vmatprep.subr.mxu0 0.0
    %616 = vmatpush1.msra.mxu0 0.0
    %617 = vmatprep.subr.mxu0 0.0
    %618 = vmatpush1.msra.mxu0 0.0
    %619 = vmatprep.subr.mxu0 0.0
    %620 = vmatpush1.msra.mxu0 0.0
    %621 = vmatprep.subr.mxu0 0.0
    %622 = vmatpush1.msra.mxu0 0.0
    %623 = vmatprep.subr.mxu0 0.0
    %624 = vmatpush1.msra.mxu0 0.0
    %625 = vmatprep.subr.mxu0 0.0
    %626 = vmatpush1.msra.mxu0 0.0
    %627 = vmatprep.subr.mxu0 0.0
    %628 = vmatpush1.msra.mxu0 0.0
    %629 = vmatprep.subr.mxu0 0.0
    %630 = vmatpush1.msra.mxu0 0.0
    %631 = vmatprep.subr.mxu0 0.0
    %632 = vmatpush1.msra.mxu0 0.0
    %633 = vmatprep.subr.mxu0 0.0
    %634 = vmatpush1.msra.mxu0 0.0
    %635 = vmatprep.subr.mxu0 0.0
    %636 = vmatpush1.msra.mxu0 0.0
    %637 = vmatprep.mubr.f32.mxu0 0.0
    %638 = vmatmul.mubr.f32.gmra.mrb[0].mxu0 %v571
    %v639 = vpop.f32.mrb[0].mxu0
    %v640 = vadd.f32 %v567, %v639
    %v641 = vpop.f32.mrb[0].mxu0
    %642 = vdwg.mxu0
    %v643 = vadd.f32 %v640, %v420
    %v644 = vtanh.pop %v643
    %v645 = vld [vmem:[#allocation2 + $0x4] sm:$0x3]
    %646 = vmatprep.subr.mxu0 0.0
    %647 = vmatpush1.msra.mxu0 %v184
    %648 = vmatprep.subr.mxu0 0.0
    %649 = vmatpush1.msra.mxu0 %v185
    %650 = vmatprep.subr.mxu0 0.0
    %651 = vmatpush1.msra.mxu0 %v186
    %652 = vmatprep.subr.mxu0 0.0
    %653 = vmatpush1.msra.mxu0 %v187
    %654 = vmatprep.subr.mxu0 0.0
    %655 = vmatpush1.msra.mxu0 0.0
    %656 = vmatprep.subr.mxu0 0.0
    %657 = vmatpush1.msra.mxu0 0.0
    %658 = vmatprep.subr.mxu0 0.0
    %659 = vmatpush1.msra.mxu0 0.0
    %660 = vmatprep.subr.mxu0 0.0
    %661 = vmatpush1.msra.mxu0 0.0
    %662 = vmatprep.subr.mxu0 0.0
    %663 = vmatpush1.msra.mxu0 0.0
    %664 = vmatprep.subr.mxu0 0.0
    %665 = vmatpush1.msra.mxu0 0.0
    %666 = vmatprep.subr.mxu0 0.0
    %667 = vmatpush1.msra.mxu0 0.0
    %668 = vmatprep.subr.mxu0 0.0
    %669 = vmatpush1.msra.mxu0 0.0
    %670 = vmatprep.subr.mxu0 0.0
    %671 = vmatpush1.msra.mxu0 0.0
    %672 = vmatprep.subr.mxu0 0.0
    %673 = vmatpush1.msra.mxu0 0.0
    %674 = vmatprep.subr.mxu0 0.0
    %675 = vmatpush1.msra.mxu0 0.0
    %676 = vmatprep.subr.mxu0 0.0
    %677 = vmatpush1.msra.mxu0 0.0
    %678 = vmatprep.subr.mxu0 0.0
    %679 = vmatpush1.msra.mxu0 0.0
    %680 = vmatprep.subr.mxu0 0.0
    %681 = vmatpush1.msra.mxu0 0.0
    %682 = vmatprep.subr.mxu0 0.0
    %683 = vmatpush1.msra.mxu0 0.0
    %684 = vmatprep.subr.mxu0 0.0
    %685 = vmatpush1.msra.mxu0 0.0
    %686 = vmatprep.subr.mxu0 0.0
    %687 = vmatpush1.msra.mxu0 0.0
    %688 = vmatprep.subr.mxu0 0.0
    %689 = vmatpush1.msra.mxu0 0.0
    %690 = vmatprep.subr.mxu0 0.0
    %691 = vmatpush1.msra.mxu0 0.0
    %692 = vmatprep.subr.mxu0 0.0
    %693 = vmatpush1.msra.mxu0 0.0
    %694 = vmatprep.subr.mxu0 0.0
    %695 = vmatpush1.msra.mxu0 0.0
    %696 = vmatprep.subr.mxu0 0.0
    %697 = vmatpush1.msra.mxu0 0.0
    %698 = vmatprep.subr.mxu0 0.0
    %699 = vmatpush1.msra.mxu0 0.0
    %700 = vmatprep.subr.mxu0 0.0
    %701 = vmatpush1.msra.mxu0 0.0
    %702 = vmatprep.subr.mxu0 0.0
    %703 = vmatpush1.msra.mxu0 0.0
    %704 = vmatprep.subr.mxu0 0.0
    %705 = vmatpush1.msra.mxu0 0.0
    %706 = vmatprep.subr.mxu0 0.0
    %707 = vmatpush1.msra.mxu0 0.0
    %708 = vmatprep.subr.mxu0 0.0
    %709 = vmatpush1.msra.mxu0 0.0
    %710 = vmatprep.mubr.f32.mxu0 0.0
    %711 = vmatmul.mubr.f32.gmra.mrb[0].mxu0 %v571
    %v712 = vpop.f32.mrb[0].mxu0
    %v713 = vadd.f32 0.0, %v712
    %v714 = vpop.f32.mrb[0].mxu0
    %715 = vdwg.mxu0
    %v716 = vadd.f32 %v645, %v713
    %v717 = vtanh.pop %v716
    %v719 = vsel %vm181, %v644, 0
    %721 = vmatprep.subr.mxu0 0.0
    %722 = vmatpush1.msra.mxu0 %v188
    %723 = vmatprep.subr.mxu0 0.0
    %724 = vmatpush1.msra.mxu0 %v189
    %725 = vmatprep.subr.mxu0 0.0
    %726 = vmatpush1.msra.mxu0 %v190
    %727 = vmatprep.subr.mxu0 0.0
    %728 = vmatpush1.msra.mxu0 %v191
    %729 = vmatprep.subr.mxu0 0.0
    %730 = vmatpush1.msra.mxu0 0.0
    %731 = vmatprep.subr.mxu0 0.0
    %732 = vmatpush1.msra.mxu0 0.0
    %733 = vmatprep.subr.mxu0 0.0
    %734 = vmatpush1.msra.mxu0 0.0
    %735 = vmatprep.subr.mxu0 0.0
    %736 = vmatpush1.msra.mxu0 0.0
    %737 = vmatprep.subr.mxu0 0.0
    %738 = vmatpush1.msra.mxu0 0.0
    %739 = vmatprep.subr.mxu0 0.0
    %740 = vmatpush1.msra.mxu0 0.0
    %741 = vmatprep.subr.mxu0 0.0
    %742 = vmatpush1.msra.mxu0 0.0
    %743 = vmatprep.subr.mxu0 0.0
    %744 = vmatpush1.msra.mxu0 0.0
    %745 = vmatprep.subr.mxu0 0.0
    %746 = vmatpush1.msra.mxu0 0.0
    %747 = vmatprep.subr.mxu0 0.0
    %748 = vmatpush1.msra.mxu0 0.0
    %749 = vmatprep.subr.mxu0 0.0
    %750 = vmatpush1.msra.mxu0 0.0
    %751 = vmatprep.subr.mxu0 0.0
    %752 = vmatpush1.msra.mxu0 0.0
    %753 = vmatprep.subr.mxu0 0.0
    %754 = vmatpush1.msra.mxu0 0.0
    %755 = vmatprep.subr.mxu0 0.0
    %756 = vmatpush1.msra.mxu0 0.0
    %757 = vmatprep.subr.mxu0 0.0
    %758 = vmatpush1.msra.mxu0 0.0
    %759 = vmatprep.subr.mxu0 0.0
    %760 = vmatpush1.msra.mxu0 0.0
    %761 = vmatprep.subr.mxu0 0.0
    %762 = vmatpush1.msra.mxu0 0.0
    %763 = vmatprep.subr.mxu0 0.0
    %764 = vmatpush1.msra.mxu0 0.0
    %765 = vmatprep.subr.mxu0 0.0
    %766 = vmatpush1.msra.mxu0 0.0
    %767 = vmatprep.subr.mxu0 0.0
    %768 = vmatpush1.msra.mxu0 0.0
    %769 = vmatprep.subr.mxu0 0.0
    %770 = vmatpush1.msra.mxu0 0.0
    %771 = vmatprep.subr.mxu0 0.0
    %772 = vmatpush1.msra.mxu0 0.0
    %773 = vmatprep.subr.mxu0 0.0
    %774 = vmatpush1.msra.mxu0 0.0
    %775 = vmatprep.subr.mxu0 0.0
    %776 = vmatpush1.msra.mxu0 0.0
    %777 = vmatprep.subr.mxu0 0.0
    %778 = vmatpush1.msra.mxu0 0.0
    %779 = vmatprep.subr.mxu0 0.0
    %780 = vmatpush1.msra.mxu0 0.0
    %781 = vmatprep.subr.mxu0 0.0
    %782 = vmatpush1.msra.mxu0 0.0
    %783 = vmatprep.subr.mxu0 0.0
    %784 = vmatpush1.msra.mxu0 0.0
    %785 = vmatprep.mubr.f32.mxu0 0.0
    %786 = vmatmul.mubr.f32.gmra.mrb[0].mxu0 %v719
    %v787 = vpop.f32.mrb[0].mxu0
    %v788 = vadd.f32 0.0, %v787
    %v789 = vpop.f32.mrb[0].mxu0
    %790 = vdwg.mxu0
    %v792 = vsel %vm181, %v717, 0
    %794 = vmatprep.subr.mxu0 0.0
    %795 = vmatpush1.msra.mxu0 %v192
    %796 = vmatprep.subr.mxu0 0.0
    %797 = vmatpush1.msra.mxu0 %v193
    %798 = vmatprep.subr.mxu0 0.0
    %799 = vmatpush1.msra.mxu0 %v194
    %800 = vmatprep.subr.mxu0 0.0
    %801 = vmatpush1.msra.mxu0 %v195
    %802 = vmatprep.subr.mxu0 0.0
    %803 = vmatpush1.msra.mxu0 0.0
    %804 = vmatprep.subr.mxu0 0.0
    %805 = vmatpush1.msra.mxu0 0.0
    %806 = vmatprep.subr.mxu0 0.0
    %807 = vmatpush1.msra.mxu0 0.0
    %808 = vmatprep.subr.mxu0 0.0
    %809 = vmatpush1.msra.mxu0 0.0
    %810 = vmatprep.subr.mxu0 0.0
    %811 = vmatpush1.msra.mxu0 0.0
    %812 = vmatprep.subr.mxu0 0.0
    %813 = vmatpush1.msra.mxu0 0.0
    %814 = vmatprep.subr.mxu0 0.0
    %815 = vmatpush1.msra.mxu0 0.0
    %816 = vmatprep.subr.mxu0 0.0
    %817 = vmatpush1.msra.mxu0 0.0
    %818 = vmatprep.subr.mxu0 0.0
    %819 = vmatpush1.msra.mxu0 0.0
    %820 = vmatprep.subr.mxu0 0.0
    %821 = vmatpush1.msra.mxu0 0.0
    %822 = vmatprep.subr.mxu0 0.0
    %823 = vmatpush1.msra.mxu0 0.0
    %824 = vmatprep.subr.mxu0 0.0
    %825 = vmatpush1.msra.mxu0 0.0
    %826 = vmatprep.subr.mxu0 0.0
    %827 = vmatpush1.msra.mxu0 0.0
    %828 = vmatprep.subr.mxu0 0.0
    %829 = vmatpush1.msra.mxu0 0.0
    %830 = vmatprep.subr.mxu0 0.0
    %831 = vmatpush1.msra.mxu0 0.0
    %832 = vmatprep.subr.mxu0 0.0
    %833 = vmatpush1.msra.mxu0 0.0
    %834 = vmatprep.subr.mxu0 0.0
    %835 = vmatpush1.msra.mxu0 0.0
    %836 = vmatprep.subr.mxu0 0.0
    %837 = vmatpush1.msra.mxu0 0.0
    %838 = vmatprep.subr.mxu0 0.0
    %839 = vmatpush1.msra.mxu0 0.0
    %840 = vmatprep.subr.mxu0 0.0
    %841 = vmatpush1.msra.mxu0 0.0
    %842 = vmatprep.subr.mxu0 0.0
    %843 = vmatpush1.msra.mxu0 0.0
    %844 = vmatprep.subr.mxu0 0.0
    %845 = vmatpush1.msra.mxu0 0.0
    %846 = vmatprep.subr.mxu0 0.0
    %847 = vmatpush1.msra.mxu0 0.0
    %848 = vmatprep.subr.mxu0 0.0
    %849 = vmatpush1.msra.mxu0 0.0
    %850 = vmatprep.subr.mxu0 0.0
    %851 = vmatpush1.msra.mxu0 0.0
    %852 = vmatprep.subr.mxu0 0.0
    %853 = vmatpush1.msra.mxu0 0.0
    %854 = vmatprep.subr.mxu0 0.0
    %855 = vmatpush1.msra.mxu0 0.0
    %856 = vmatprep.subr.mxu0 0.0
    %857 = vmatpush1.msra.mxu0 0.0
    %858 = vmatprep.mubr.f32.mxu0 0.0
    %859 = vmatmul.mubr.f32.gmra.mrb[0].mxu0 %v792
    %v860 = vpop.f32.mrb[0].mxu0
    %v861 = vadd.f32 %v788, %v860
    %v862 = vpop.f32.mrb[0].mxu0
    %863 = vdwg.mxu0
    %v864 = vadd.f32 %v861, %v420
    %v865 = vtanh.pop %v864
    %v866 = vld [vmem:[#allocation2 + $0x6] sm:$0x3]
    %867 = vmatprep.subr.mxu0 0.0
    %868 = vmatpush1.msra.mxu0 %v184
    %869 = vmatprep.subr.mxu0 0.0
    %870 = vmatpush1.msra.mxu0 %v185
    %871 = vmatprep.subr.mxu0 0.0
    %872 = vmatpush1.msra.mxu0 %v186
    %873 = vmatprep.subr.mxu0 0.0
    %874 = vmatpush1.msra.mxu0 %v187
    %875 = vmatprep.subr.mxu0 0.0
    %876 = vmatpush1.msra.mxu0 0.0
    %877 = vmatprep.subr.mxu0 0.0
    %878 = vmatpush1.msra.mxu0 0.0
    %879 = vmatprep.subr.mxu0 0.0
    %880 = vmatpush1.msra.mxu0 0.0
    %881 = vmatprep.subr.mxu0 0.0
    %882 = vmatpush1.msra.mxu0 0.0
    %883 = vmatprep.subr.mxu0 0.0
    %884 = vmatpush1.msra.mxu0 0.0
    %885 = vmatprep.subr.mxu0 0.0
    %886 = vmatpush1.msra.mxu0 0.0
    %887 = vmatprep.subr.mxu0 0.0
    %888 = vmatpush1.msra.mxu0 0.0
    %889 = vmatprep.subr.mxu0 0.0
    %890 = vmatpush1.msra.mxu0 0.0
    %891 = vmatprep.subr.mxu0 0.0
    %892 = vmatpush1.msra.mxu0 0.0
    %893 = vmatprep.subr.mxu0 0.0
    %894 = vmatpush1.msra.mxu0 0.0
    %895 = vmatprep.subr.mxu0 0.0
    %896 = vmatpush1.msra.mxu0 0.0
    %897 = vmatprep.subr.mxu0 0.0
    %898 = vmatpush1.msra.mxu0 0.0
    %899 = vmatprep.subr.mxu0 0.0
    %900 = vmatpush1.msra.mxu0 0.0
    %901 = vmatprep.subr.mxu0 0.0
    %902 = vmatpush1.msra.mxu0 0.0
    %903 = vmatprep.subr.mxu0 0.0
    %904 = vmatpush1.msra.mxu0 0.0
    %905 = vmatprep.subr.mxu0 0.0
    %906 = vmatpush1.msra.mxu0 0.0
    %907 = vmatprep.subr.mxu0 0.0
    %908 = vmatpush1.msra.mxu0 0.0
    %909 = vmatprep.subr.mxu0 0.0
    %910 = vmatpush1.msra.mxu0 0.0
    %911 = vmatprep.subr.mxu0 0.0
    %912 = vmatpush1.msra.mxu0 0.0
    %913 = vmatprep.subr.mxu0 0.0
    %914 = vmatpush1.msra.mxu0 0.0
    %915 = vmatprep.subr.mxu0 0.0
    %916 = vmatpush1.msra.mxu0 0.0
    %917 = vmatprep.subr.mxu0 0.0
    %918 = vmatpush1.msra.mxu0 0.0
    %919 = vmatprep.subr.mxu0 0.0
    %920 = vmatpush1.msra.mxu0 0.0
    %921 = vmatprep.subr.mxu0 0.0
    %922 = vmatpush1.msra.mxu0 0.0
    %923 = vmatprep.subr.mxu0 0.0
    %924 = vmatpush1.msra.mxu0 0.0
    %925 = vmatprep.subr.mxu0 0.0
    %926 = vmatpush1.msra.mxu0 0.0
    %927 = vmatprep.subr.mxu0 0.0
    %928 = vmatpush1.msra.mxu0 0.0
    %929 = vmatprep.subr.mxu0 0.0
    %930 = vmatpush1.msra.mxu0 0.0
    %931 = vmatprep.mubr.f32.mxu0 0.0
    %932 = vmatmul.mubr.f32.gmra.mrb[0].mxu0 %v792
    %v933 = vpop.f32.mrb[0].mxu0
    %v934 = vadd.f32 0.0, %v933
    %v935 = vpop.f32.mrb[0].mxu0
    %936 = vdwg.mxu0
    %v937 = vadd.f32 %v866, %v934
    %v938 = vtanh.pop %v937
    %v940 = vsel %vm181, %v865, 0
    %942 = vmatprep.subr.mxu0 0.0
    %943 = vmatpush1.msra.mxu0 %v188
    %944 = vmatprep.subr.mxu0 0.0
    %945 = vmatpush1.msra.mxu0 %v189
    %946 = vmatprep.subr.mxu0 0.0
    %947 = vmatpush1.msra.mxu0 %v190
    %948 = vmatprep.subr.mxu0 0.0
    %949 = vmatpush1.msra.mxu0 %v191
    %950 = vmatprep.subr.mxu0 0.0
    %951 = vmatpush1.msra.mxu0 0.0
    %952 = vmatprep.subr.mxu0 0.0
    %953 = vmatpush1.msra.mxu0 0.0
    %954 = vmatprep.subr.mxu0 0.0
    %955 = vmatpush1.msra.mxu0 0.0
    %956 = vmatprep.subr.mxu0 0.0
    %957 = vmatpush1.msra.mxu0 0.0
    %958 = vmatprep.subr.mxu0 0.0
    %959 = vmatpush1.msra.mxu0 0.0
    %960 = vmatprep.subr.mxu0 0.0
    %961 = vmatpush1.msra.mxu0 0.0
    %962 = vmatprep.subr.mxu0 0.0
    %963 = vmatpush1.msra.mxu0 0.0
    %964 = vmatprep.subr.mxu0 0.0
    %965 = vmatpush1.msra.mxu0 0.0
    %966 = vmatprep.subr.mxu0 0.0
    %967 = vmatpush1.msra.mxu0 0.0
    %968 = vmatprep.subr.mxu0 0.0
    %969 = vmatpush1.msra.mxu0 0.0
    %970 = vmatprep.subr.mxu0 0.0
    %971 = vmatpush1.msra.mxu0 0.0
    %972 = vmatprep.subr.mxu0 0.0
    %973 = vmatpush1.msra.mxu0 0.0
    %974 = vmatprep.subr.mxu0 0.0
    %975 = vmatpush1.msra.mxu0 0.0
    %976 = vmatprep.subr.mxu0 0.0
    %977 = vmatpush1.msra.mxu0 0.0
    %978 = vmatprep.subr.mxu0 0.0
    %979 = vmatpush1.msra.mxu0 0.0
    %980 = vmatprep.subr.mxu0 0.0
    %981 = vmatpush1.msra.mxu0 0.0
    %982 = vmatprep.subr.mxu0 0.0
    %983 = vmatpush1.msra.mxu0 0.0
    %984 = vmatprep.subr.mxu0 0.0
    %985 = vmatpush1.msra.mxu0 0.0
    %986 = vmatprep.subr.mxu0 0.0
    %987 = vmatpush1.msra.mxu0 0.0
    %988 = vmatprep.subr.mxu0 0.0
    %989 = vmatpush1.msra.mxu0 0.0
    %990 = vmatprep.subr.mxu0 0.0
    %991 = vmatpush1.msra.mxu0 0.0
    %992 = vmatprep.subr.mxu0 0.0
    %993 = vmatpush1.msra.mxu0 0.0
    %994 = vmatprep.subr.mxu0 0.0
    %995 = vmatpush1.msra.mxu0 0.0
    %996 = vmatprep.subr.mxu0 0.0
    %997 = vmatpush1.msra.mxu0 0.0
    %998 = vmatprep.subr.mxu0 0.0
    %999 = vmatpush1.msra.mxu0 0.0
    %1000 = vmatprep.subr.mxu0 0.0
    %1001 = vmatpush1.msra.mxu0 0.0
    %1002 = vmatprep.subr.mxu0 0.0
    %1003 = vmatpush1.msra.mxu0 0.0
    %1004 = vmatprep.subr.mxu0 0.0
    %1005 = vmatpush1.msra.mxu0 0.0
    %1006 = vmatprep.mubr.f32.mxu0 0.0
    %1007 = vmatmul.mubr.f32.gmra.mrb[0].mxu0 %v940
    %v1008 = vpop.f32.mrb[0].mxu0
    %v1009 = vadd.f32 0.0, %v1008
    %v1010 = vpop.f32.mrb[0].mxu0
    %1011 = vdwg.mxu0
    %v1013 = vsel %vm181, %v938, 0
    %1015 = vmatprep.subr.mxu0 0.0
    %1016 = vmatpush1.msra.mxu0 %v192
    %1017 = vmatprep.subr.mxu0 0.0
    %1018 = vmatpush1.msra.mxu0 %v193
    %1019 = vmatprep.subr.mxu0 0.0
    %1020 = vmatpush1.msra.mxu0 %v194
    %1021 = vmatprep.subr.mxu0 0.0
    %1022 = vmatpush1.msra.mxu0 %v195
    %1023 = vmatprep.subr.mxu0 0.0
    %1024 = vmatpush1.msra.mxu0 0.0
    %1025 = vmatprep.subr.mxu0 0.0
    %1026 = vmatpush1.msra.mxu0 0.0
    %1027 = vmatprep.subr.mxu0 0.0
    %1028 = vmatpush1.msra.mxu0 0.0
    %1029 = vmatprep.subr.mxu0 0.0
    %1030 = vmatpush1.msra.mxu0 0.0
    %1031 = vmatprep.subr.mxu0 0.0
    %1032 = vmatpush1.msra.mxu0 0.0
    %1033 = vmatprep.subr.mxu0 0.0
    %1034 = vmatpush1.msra.mxu0 0.0
    %1035 = vmatprep.subr.mxu0 0.0
    %1036 = vmatpush1.msra.mxu0 0.0
    %1037 = vmatprep.subr.mxu0 0.0
    %1038 = vmatpush1.msra.mxu0 0.0
    %1039 = vmatprep.subr.mxu0 0.0
    %1040 = vmatpush1.msra.mxu0 0.0
    %1041 = vmatprep.subr.mxu0 0.0
    %1042 = vmatpush1.msra.mxu0 0.0
    %1043 = vmatprep.subr.mxu0 0.0
    %1044 = vmatpush1.msra.mxu0 0.0
    %1045 = vmatprep.subr.mxu0 0.0
    %1046 = vmatpush1.msra.mxu0 0.0
    %1047 = vmatprep.subr.mxu0 0.0
    %1048 = vmatpush1.msra.mxu0 0.0
    %1049 = vmatprep.subr.mxu0 0.0
    %1050 = vmatpush1.msra.mxu0 0.0
    %1051 = vmatprep.subr.mxu0 0.0
    %1052 = vmatpush1.msra.mxu0 0.0
    %1053 = vmatprep.subr.mxu0 0.0
    %1054 = vmatpush1.msra.mxu0 0.0
    %1055 = vmatprep.subr.mxu0 0.0
    %1056 = vmatpush1.msra.mxu0 0.0
    %1057 = vmatprep.subr.mxu0 0.0
    %1058 = vmatpush1.msra.mxu0 0.0
    %1059 = vmatprep.subr.mxu0 0.0
    %1060 = vmatpush1.msra.mxu0 0.0
    %1061 = vmatprep.subr.mxu0 0.0
    %1062 = vmatpush1.msra.mxu0 0.0
    %1063 = vmatprep.subr.mxu0 0.0
    %1064 = vmatpush1.msra.mxu0 0.0
    %1065 = vmatprep.subr.mxu0 0.0
    %1066 = vmatpush1.msra.mxu0 0.0
    %1067 = vmatprep.subr.mxu0 0.0
    %1068 = vmatpush1.msra.mxu0 0.0
    %1069 = vmatprep.subr.mxu0 0.0
    %1070 = vmatpush1.msra.mxu0 0.0
    %1071 = vmatprep.subr.mxu0 0.0
    %1072 = vmatpush1.msra.mxu0 0.0
    %1073 = vmatprep.subr.mxu0 0.0
    %1074 = vmatpush1.msra.mxu0 0.0
    %1075 = vmatprep.subr.mxu0 0.0
    %1076 = vmatpush1.msra.mxu0 0.0
    %1077 = vmatprep.subr.mxu0 0.0
    %1078 = vmatpush1.msra.mxu0 0.0
    %1079 = vmatprep.mubr.f32.mxu0 0.0
    %1080 = vmatmul.mubr.f32.gmra.mrb[0].mxu0 %v1013
    %v1081 = vpop.f32.mrb[0].mxu0
    %v1082 = vadd.f32 %v1009, %v1081
    %v1083 = vpop.f32.mrb[0].mxu0
    %1084 = vdwg.mxu0
    %v1085 = vadd.f32 %v1082, %v420
    %v1086 = vtanh.pop %v1085
    %v1087 = vld [vmem:[#allocation2 + $0x8] sm:$0x3]
    %1088 = vmatprep.subr.mxu0 0.0
    %1089 = vmatpush1.msra.mxu0 %v184
    %1090 = vmatprep.subr.mxu0 0.0
    %1091 = vmatpush1.msra.mxu0 %v185
    %1092 = vmatprep.subr.mxu0 0.0
    %1093 = vmatpush1.msra.mxu0 %v186
    %1094 = vmatprep.subr.mxu0 0.0
    %1095 = vmatpush1.msra.mxu0 %v187
    %1096 = vmatprep.subr.mxu0 0.0
    %1097 = vmatpush1.msra.mxu0 0.0
    %1098 = vmatprep.subr.mxu0 0.0
    %1099 = vmatpush1.msra.mxu0 0.0
    %1100 = vmatprep.subr.mxu0 0.0
    %1101 = vmatpush1.msra.mxu0 0.0
    %1102 = vmatprep.subr.mxu0 0.0
    %1103 = vmatpush1.msra.mxu0 0.0
    %1104 = vmatprep.subr.mxu0 0.0
    %1105 = vmatpush1.msra.mxu0 0.0
    %1106 = vmatprep.subr.mxu0 0.0
    %1107 = vmatpush1.msra.mxu0 0.0
    %1108 = vmatprep.subr.mxu0 0.0
    %1109 = vmatpush1.msra.mxu0 0.0
    %1110 = vmatprep.subr.mxu0 0.0
    %1111 = vmatpush1.msra.mxu0 0.0
    %1112 = vmatprep.subr.mxu0 0.0
    %1113 = vmatpush1.msra.mxu0 0.0
    %1114 = vmatprep.subr.mxu0 0.0
    %1115 = vmatpush1.msra.mxu0 0.0
    %1116 = vmatprep.subr.mxu0 0.0
    %1117 = vmatpush1.msra.mxu0 0.0
    %1118 = vmatprep.subr.mxu0 0.0
    %1119 = vmatpush1.msra.mxu0 0.0
    %1120 = vmatprep.subr.mxu0 0.0
    %1121 = vmatpush1.msra.mxu0 0.0
    %1122 = vmatprep.subr.mxu0 0.0
    %1123 = vmatpush1.msra.mxu0 0.0
    %1124 = vmatprep.subr.mxu0 0.0
    %1125 = vmatpush1.msra.mxu0 0.0
    %1126 = vmatprep.subr.mxu0 0.0
    %1127 = vmatpush1.msra.mxu0 0.0
    %1128 = vmatprep.subr.mxu0 0.0
    %1129 = vmatpush1.msra.mxu0 0.0
    %1130 = vmatprep.subr.mxu0 0.0
    %1131 = vmatpush1.msra.mxu0 0.0
    %1132 = vmatprep.subr.mxu0 0.0
    %1133 = vmatpush1.msra.mxu0 0.0
    %1134 = vmatprep.subr.mxu0 0.0
    %1135 = vmatpush1.msra.mxu0 0.0
    %1136 = vmatprep.subr.mxu0 0.0
    %1137 = vmatpush1.msra.mxu0 0.0
    %1138 = vmatprep.subr.mxu0 0.0
    %1139 = vmatpush1.msra.mxu0 0.0
    %1140 = vmatprep.subr.mxu0 0.0
    %1141 = vmatpush1.msra.mxu0 0.0
    %1142 = vmatprep.subr.mxu0 0.0
    %1143 = vmatpush1.msra.mxu0 0.0
    %1144 = vmatprep.subr.mxu0 0.0
    %1145 = vmatpush1.msra.mxu0 0.0
    %1146 = vmatprep.subr.mxu0 0.0
    %1147 = vmatpush1.msra.mxu0 0.0
    %1148 = vmatprep.subr.mxu0 0.0
    %1149 = vmatpush1.msra.mxu0 0.0
    %1150 = vmatprep.subr.mxu0 0.0
    %1151 = vmatpush1.msra.mxu0 0.0
    %1152 = vmatprep.mubr.f32.mxu0 0.0
    %1153 = vmatmul.mubr.f32.gmra.mrb[0].mxu0 %v1013
    %v1154 = vpop.f32.mrb[0].mxu0
    %v1155 = vadd.f32 0.0, %v1154
    %v1156 = vpop.f32.mrb[0].mxu0
    %1157 = vdwg.mxu0
    %v1158 = vadd.f32 %v1087, %v1155
    %v1159 = vtanh.pop %v1158
    %v1161 = vsel %vm181, %v1086, 0
    %1163 = vmatprep.subr.mxu0 0.0
    %1164 = vmatpush1.msra.mxu0 %v188
    %1165 = vmatprep.subr.mxu0 0.0
    %1166 = vmatpush1.msra.mxu0 %v189
    %1167 = vmatprep.subr.mxu0 0.0
    %1168 = vmatpush1.msra.mxu0 %v190
    %1169 = vmatprep.subr.mxu0 0.0
    %1170 = vmatpush1.msra.mxu0 %v191
    %1171 = vmatprep.subr.mxu0 0.0
    %1172 = vmatpush1.msra.mxu0 0.0
    %1173 = vmatprep.subr.mxu0 0.0
    %1174 = vmatpush1.msra.mxu0 0.0
    %1175 = vmatprep.subr.mxu0 0.0
    %1176 = vmatpush1.msra.mxu0 0.0
    %1177 = vmatprep.subr.mxu0 0.0
    %1178 = vmatpush1.msra.mxu0 0.0
    %1179 = vmatprep.subr.mxu0 0.0
    %1180 = vmatpush1.msra.mxu0 0.0
    %1181 = vmatprep.subr.mxu0 0.0
    %1182 = vmatpush1.msra.mxu0 0.0
    %1183 = vmatprep.subr.mxu0 0.0
    %1184 = vmatpush1.msra.mxu0 0.0
    %1185 = vmatprep.subr.mxu0 0.0
    %1186 = vmatpush1.msra.mxu0 0.0
    %1187 = vmatprep.subr.mxu0 0.0
    %1188 = vmatpush1.msra.mxu0 0.0
    %1189 = vmatprep.subr.mxu0 0.0
    %1190 = vmatpush1.msra.mxu0 0.0
    %1191 = vmatprep.subr.mxu0 0.0
    %1192 = vmatpush1.msra.mxu0 0.0
    %1193 = vmatprep.subr.mxu0 0.0
    %1194 = vmatpush1.msra.mxu0 0.0
    %1195 = vmatprep.subr.mxu0 0.0
    %1196 = vmatpush1.msra.mxu0 0.0
    %1197 = vmatprep.subr.mxu0 0.0
    %1198 = vmatpush1.msra.mxu0 0.0
    %1199 = vmatprep.subr.mxu0 0.0
    %1200 = vmatpush1.msra.mxu0 0.0
    %1201 = vmatprep.subr.mxu0 0.0
    %1202 = vmatpush1.msra.mxu0 0.0
    %1203 = vmatprep.subr.mxu0 0.0
    %1204 = vmatpush1.msra.mxu0 0.0
    %1205 = vmatprep.subr.mxu0 0.0
    %1206 = vmatpush1.msra.mxu0 0.0
    %1207 = vmatprep.subr.mxu0 0.0
    %1208 = vmatpush1.msra.mxu0 0.0
    %1209 = vmatprep.subr.mxu0 0.0
    %1210 = vmatpush1.msra.mxu0 0.0
    %1211 = vmatprep.subr.mxu0 0.0
    %1212 = vmatpush1.msra.mxu0 0.0
    %1213 = vmatprep.subr.mxu0 0.0
    %1214 = vmatpush1.msra.mxu0 0.0
    %1215 = vmatprep.subr.mxu0 0.0
    %1216 = vmatpush1.msra.mxu0 0.0
    %1217 = vmatprep.subr.mxu0 0.0
    %1218 = vmatpush1.msra.mxu0 0.0
    %1219 = vmatprep.subr.mxu0 0.0
    %1220 = vmatpush1.msra.mxu0 0.0
    %1221 = vmatprep.subr.mxu0 0.0
    %1222 = vmatpush1.msra.mxu0 0.0
    %1223 = vmatprep.subr.mxu0 0.0
    %1224 = vmatpush1.msra.mxu0 0.0
    %1225 = vmatprep.subr.mxu0 0.0
    %1226 = vmatpush1.msra.mxu0 0.0
    %1227 = vmatprep.mubr.f32.mxu0 0.0
    %1228 = vmatmul.mubr.f32.gmra.mrb[0].mxu0 %v1161
    %v1229 = vpop.f32.mrb[0].mxu0
    %v1230 = vadd.f32 0.0, %v1229
    %v1231 = vpop.f32.mrb[0].mxu0
    %1232 = vdwg.mxu0
    %v1234 = vsel %vm181, %v1159, 0
    %1236 = vmatprep.subr.mxu0 0.0
    %1237 = vmatpush1.msra.mxu0 %v192
    %1238 = vmatprep.subr.mxu0 0.0
    %1239 = vmatpush1.msra.mxu0 %v193
    %1240 = vmatprep.subr.mxu0 0.0
    %1241 = vmatpush1.msra.mxu0 %v194
    %1242 = vmatprep.subr.mxu0 0.0
    %1243 = vmatpush1.msra.mxu0 %v195
    %1244 = vmatprep.subr.mxu0 0.0
    %1245 = vmatpush1.msra.mxu0 0.0
    %1246 = vmatprep.subr.mxu0 0.0
    %1247 = vmatpush1.msra.mxu0 0.0
    %1248 = vmatprep.subr.mxu0 0.0
    %1249 = vmatpush1.msra.mxu0 0.0
    %1250 = vmatprep.subr.mxu0 0.0
    %1251 = vmatpush1.msra.mxu0 0.0
    %1252 = vmatprep.subr.mxu0 0.0
    %1253 = vmatpush1.msra.mxu0 0.0
    %1254 = vmatprep.subr.mxu0 0.0
    %1255 = vmatpush1.msra.mxu0 0.0
    %1256 = vmatprep.subr.mxu0 0.0
    %1257 = vmatpush1.msra.mxu0 0.0
    %1258 = vmatprep.subr.mxu0 0.0
    %1259 = vmatpush1.msra.mxu0 0.0
    %1260 = vmatprep.subr.mxu0 0.0
    %1261 = vmatpush1.msra.mxu0 0.0
    %1262 = vmatprep.subr.mxu0 0.0
    %1263 = vmatpush1.msra.mxu0 0.0
    %1264 = vmatprep.subr.mxu0 0.0
    %1265 = vmatpush1.msra.mxu0 0.0
    %1266 = vmatprep.subr.mxu0 0.0
    %1267 = vmatpush1.msra.mxu0 0.0
    %1268 = vmatprep.subr.mxu0 0.0
    %1269 = vmatpush1.msra.mxu0 0.0
    %1270 = vmatprep.subr.mxu0 0.0
    %1271 = vmatpush1.msra.mxu0 0.0
    %1272 = vmatprep.subr.mxu0 0.0
    %1273 = vmatpush1.msra.mxu0 0.0
    %1274 = vmatprep.subr.mxu0 0.0
    %1275 = vmatpush1.msra.mxu0 0.0
    %1276 = vmatprep.subr.mxu0 0.0
    %1277 = vmatpush1.msra.mxu0 0.0
    %1278 = vmatprep.subr.mxu0 0.0
    %1279 = vmatpush1.msra.mxu0 0.0
    %1280 = vmatprep.subr.mxu0 0.0
    %1281 = vmatpush1.msra.mxu0 0.0
    %1282 = vmatprep.subr.mxu0 0.0
    %1283 = vmatpush1.msra.mxu0 0.0
    %1284 = vmatprep.subr.mxu0 0.0
    %1285 = vmatpush1.msra.mxu0 0.0
    %1286 = vmatprep.subr.mxu0 0.0
    %1287 = vmatpush1.msra.mxu0 0.0
    %1288 = vmatprep.subr.mxu0 0.0
    %1289 = vmatpush1.msra.mxu0 0.0
    %1290 = vmatprep.subr.mxu0 0.0
    %1291 = vmatpush1.msra.mxu0 0.0
    %1292 = vmatprep.subr.mxu0 0.0
    %1293 = vmatpush1.msra.mxu0 0.0
    %1294 = vmatprep.subr.mxu0 0.0
    %1295 = vmatpush1.msra.mxu0 0.0
    %1296 = vmatprep.subr.mxu0 0.0
    %1297 = vmatpush1.msra.mxu0 0.0
    %1298 = vmatprep.subr.mxu0 0.0
    %1299 = vmatpush1.msra.mxu0 0.0
    %1300 = vmatprep.mubr.f32.mxu0 0.0
    %1301 = vmatmul.mubr.f32.gmra.mrb[0].mxu0 %v1234
    %v1302 = vpop.f32.mrb[0].mxu0
    %v1303 = vadd.f32 %v1230, %v1302
    %v1304 = vpop.f32.mrb[0].mxu0
    %1305 = vdwg.mxu0
    %v1306 = vadd.f32 %v1303, %v420
    %v1307 = vtanh.pop %v1306
    %v1308 = vld [vmem:[#allocation2 + $0xa] sm:$0x3]
    %1309 = vmatprep.subr.mxu0 0.0
    %1310 = vmatpush1.msra.mxu0 %v184
    %1311 = vmatprep.subr.mxu0 0.0
    %1312 = vmatpush1.msra.mxu0 %v185
    %1313 = vmatprep.subr.mxu0 0.0
    %1314 = vmatpush1.msra.mxu0 %v186
    %1315 = vmatprep.subr.mxu0 0.0
    %1316 = vmatpush1.msra.mxu0 %v187
    %1317 = vmatprep.subr.mxu0 0.0
    %1318 = vmatpush1.msra.mxu0 0.0
    %1319 = vmatprep.subr.mxu0 0.0
    %1320 = vmatpush1.msra.mxu0 0.0
    %1321 = vmatprep.subr.mxu0 0.0
    %1322 = vmatpush1.msra.mxu0 0.0
    %1323 = vmatprep.subr.mxu0 0.0
    %1324 = vmatpush1.msra.mxu0 0.0
    %1325 = vmatprep.subr.mxu0 0.0
    %1326 = vmatpush1.msra.mxu0 0.0
    %1327 = vmatprep.subr.mxu0 0.0
    %1328 = vmatpush1.msra.mxu0 0.0
    %1329 = vmatprep.subr.mxu0 0.0
    %1330 = vmatpush1.msra.mxu0 0.0
    %1331 = vmatprep.subr.mxu0 0.0
    %1332 = vmatpush1.msra.mxu0 0.0
    %1333 = vmatprep.subr.mxu0 0.0
    %1334 = vmatpush1.msra.mxu0 0.0
    %1335 = vmatprep.subr.mxu0 0.0
    %1336 = vmatpush1.msra.mxu0 0.0
    %1337 = vmatprep.subr.mxu0 0.0
    %1338 = vmatpush1.msra.mxu0 0.0
    %1339 = vmatprep.subr.mxu0 0.0
    %1340 = vmatpush1.msra.mxu0 0.0
    %1341 = vmatprep.subr.mxu0 0.0
    %1342 = vmatpush1.msra.mxu0 0.0
    %1343 = vmatprep.subr.mxu0 0.0
    %1344 = vmatpush1.msra.mxu0 0.0
    %1345 = vmatprep.subr.mxu0 0.0
    %1346 = vmatpush1.msra.mxu0 0.0
    %1347 = vmatprep.subr.mxu0 0.0
    %1348 = vmatpush1.msra.mxu0 0.0
    %1349 = vmatprep.subr.mxu0 0.0
    %1350 = vmatpush1.msra.mxu0 0.0
    %1351 = vmatprep.subr.mxu0 0.0
    %1352 = vmatpush1.msra.mxu0 0.0
    %1353 = vmatprep.subr.mxu0 0.0
    %1354 = vmatpush1.msra.mxu0 0.0
    %1355 = vmatprep.subr.mxu0 0.0
    %1356 = vmatpush1.msra.mxu0 0.0
    %1357 = vmatprep.subr.mxu0 0.0
    %1358 = vmatpush1.msra.mxu0 0.0
    %1359 = vmatprep.subr.mxu0 0.0
    %1360 = vmatpush1.msra.mxu0 0.0
    %1361 = vmatprep.subr.mxu0 0.0
    %1362 = vmatpush1.msra.mxu0 0.0
    %1363 = vmatprep.subr.mxu0 0.0
    %1364 = vmatpush1.msra.mxu0 0.0
    %1365 = vmatprep.subr.mxu0 0.0
    %1366 = vmatpush1.msra.mxu0 0.0
    %1367 = vmatprep.subr.mxu0 0.0
    %1368 = vmatpush1.msra.mxu0 0.0
    %1369 = vmatprep.subr.mxu0 0.0
    %1370 = vmatpush1.msra.mxu0 0.0
    %1371 = vmatprep.subr.mxu0 0.0
    %1372 = vmatpush1.msra.mxu0 0.0
    %1373 = vmatprep.mubr.f32.mxu0 0.0
    %1374 = vmatmul.mubr.f32.gmra.mrb[0].mxu0 %v1234
    %v1375 = vpop.f32.mrb[0].mxu0
    %v1376 = vadd.f32 0.0, %v1375
    %v1377 = vpop.f32.mrb[0].mxu0
    %1378 = vdwg.mxu0
    %v1379 = vadd.f32 %v1308, %v1376
    %v1380 = vtanh.pop %v1379
    %v1382 = vsel %vm181, %v1307, 0
    %1384 = vmatprep.subr.mxu0 0.0
    %1385 = vmatpush1.msra.mxu0 %v188
    %1386 = vmatprep.subr.mxu0 0.0
    %1387 = vmatpush1.msra.mxu0 %v189
    %1388 = vmatprep.subr.mxu0 0.0
    %1389 = vmatpush1.msra.mxu0 %v190
    %1390 = vmatprep.subr.mxu0 0.0
    %1391 = vmatpush1.msra.mxu0 %v191
    %1392 = vmatprep.subr.mxu0 0.0
    %1393 = vmatpush1.msra.mxu0 0.0
    %1394 = vmatprep.subr.mxu0 0.0
    %1395 = vmatpush1.msra.mxu0 0.0
    %1396 = vmatprep.subr.mxu0 0.0
    %1397 = vmatpush1.msra.mxu0 0.0
    %1398 = vmatprep.subr.mxu0 0.0
    %1399 = vmatpush1.msra.mxu0 0.0
    %1400 = vmatprep.subr.mxu0 0.0
    %1401 = vmatpush1.msra.mxu0 0.0
    %1402 = vmatprep.subr.mxu0 0.0
    %1403 = vmatpush1.msra.mxu0 0.0
    %1404 = vmatprep.subr.mxu0 0.0
    %1405 = vmatpush1.msra.mxu0 0.0
    %1406 = vmatprep.subr.mxu0 0.0
    %1407 = vmatpush1.msra.mxu0 0.0
    %1408 = vmatprep.subr.mxu0 0.0
    %1409 = vmatpush1.msra.mxu0 0.0
    %1410 = vmatprep.subr.mxu0 0.0
    %1411 = vmatpush1.msra.mxu0 0.0
    %1412 = vmatprep.subr.mxu0 0.0
    %1413 = vmatpush1.msra.mxu0 0.0
    %1414 = vmatprep.subr.mxu0 0.0
    %1415 = vmatpush1.msra.mxu0 0.0
    %1416 = vmatprep.subr.mxu0 0.0
    %1417 = vmatpush1.msra.mxu0 0.0
    %1418 = vmatprep.subr.mxu0 0.0
    %1419 = vmatpush1.msra.mxu0 0.0
    %1420 = vmatprep.subr.mxu0 0.0
    %1421 = vmatpush1.msra.mxu0 0.0
    %1422 = vmatprep.subr.mxu0 0.0
    %1423 = vmatpush1.msra.mxu0 0.0
    %1424 = vmatprep.subr.mxu0 0.0
    %1425 = vmatpush1.msra.mxu0 0.0
    %1426 = vmatprep.subr.mxu0 0.0
    %1427 = vmatpush1.msra.mxu0 0.0
    %1428 = vmatprep.subr.mxu0 0.0
    %1429 = vmatpush1.msra.mxu0 0.0
    %1430 = vmatprep.subr.mxu0 0.0
    %1431 = vmatpush1.msra.mxu0 0.0
    %1432 = vmatprep.subr.mxu0 0.0
    %1433 = vmatpush1.msra.mxu0 0.0
    %1434 = vmatprep.subr.mxu0 0.0
    %1435 = vmatpush1.msra.mxu0 0.0
    %1436 = vmatprep.subr.mxu0 0.0
    %1437 = vmatpush1.msra.mxu0 0.0
    %1438 = vmatprep.subr.mxu0 0.0
    %1439 = vmatpush1.msra.mxu0 0.0
    %1440 = vmatprep.subr.mxu0 0.0
    %1441 = vmatpush1.msra.mxu0 0.0
    %1442 = vmatprep.subr.mxu0 0.0
    %1443 = vmatpush1.msra.mxu0 0.0
    %1444 = vmatprep.subr.mxu0 0.0
    %1445 = vmatpush1.msra.mxu0 0.0
    %1446 = vmatprep.subr.mxu0 0.0
    %1447 = vmatpush1.msra.mxu0 0.0
    %1448 = vmatprep.mubr.f32.mxu0 0.0
    %1449 = vmatmul.mubr.f32.gmra.mrb[0].mxu0 %v1382
    %v1450 = vpop.f32.mrb[0].mxu0
    %v1451 = vadd.f32 0.0, %v1450
    %v1452 = vpop.f32.mrb[0].mxu0
    %1453 = vdwg.mxu0
    %v1455 = vsel %vm181, %v1380, 0
    %1457 = vmatprep.subr.mxu0 0.0
    %1458 = vmatpush1.msra.mxu0 %v192
    %1459 = vmatprep.subr.mxu0 0.0
    %1460 = vmatpush1.msra.mxu0 %v193
    %1461 = vmatprep.subr.mxu0 0.0
    %1462 = vmatpush1.msra.mxu0 %v194
    %1463 = vmatprep.subr.mxu0 0.0
    %1464 = vmatpush1.msra.mxu0 %v195
    %1465 = vmatprep.subr.mxu0 0.0
    %1466 = vmatpush1.msra.mxu0 0.0
    %1467 = vmatprep.subr.mxu0 0.0
    %1468 = vmatpush1.msra.mxu0 0.0
    %1469 = vmatprep.subr.mxu0 0.0
    %1470 = vmatpush1.msra.mxu0 0.0
    %1471 = vmatprep.subr.mxu0 0.0
    %1472 = vmatpush1.msra.mxu0 0.0
    %1473 = vmatprep.subr.mxu0 0.0
    %1474 = vmatpush1.msra.mxu0 0.0
    %1475 = vmatprep.subr.mxu0 0.0
    %1476 = vmatpush1.msra.mxu0 0.0
    %1477 = vmatprep.subr.mxu0 0.0
    %1478 = vmatpush1.msra.mxu0 0.0
    %1479 = vmatprep.subr.mxu0 0.0
    %1480 = vmatpush1.msra.mxu0 0.0
    %1481 = vmatprep.subr.mxu0 0.0
    %1482 = vmatpush1.msra.mxu0 0.0
    %1483 = vmatprep.subr.mxu0 0.0
    %1484 = vmatpush1.msra.mxu0 0.0
    %1485 = vmatprep.subr.mxu0 0.0
    %1486 = vmatpush1.msra.mxu0 0.0
    %1487 = vmatprep.subr.mxu0 0.0
    %1488 = vmatpush1.msra.mxu0 0.0
    %1489 = vmatprep.subr.mxu0 0.0
    %1490 = vmatpush1.msra.mxu0 0.0
    %1491 = vmatprep.subr.mxu0 0.0
    %1492 = vmatpush1.msra.mxu0 0.0
    %1493 = vmatprep.subr.mxu0 0.0
    %1494 = vmatpush1.msra.mxu0 0.0
    %1495 = vmatprep.subr.mxu0 0.0
    %1496 = vmatpush1.msra.mxu0 0.0
    %1497 = vmatprep.subr.mxu0 0.0
    %1498 = vmatpush1.msra.mxu0 0.0
    %1499 = vmatprep.subr.mxu0 0.0
    %1500 = vmatpush1.msra.mxu0 0.0
    %1501 = vmatprep.subr.mxu0 0.0
    %1502 = vmatpush1.msra.mxu0 0.0
    %1503 = vmatprep.subr.mxu0 0.0
    %1504 = vmatpush1.msra.mxu0 0.0
    %1505 = vmatprep.subr.mxu0 0.0
    %1506 = vmatpush1.msra.mxu0 0.0
    %1507 = vmatprep.subr.mxu0 0.0
    %1508 = vmatpush1.msra.mxu0 0.0
    %1509 = vmatprep.subr.mxu0 0.0
    %1510 = vmatpush1.msra.mxu0 0.0
    %1511 = vmatprep.subr.mxu0 0.0
    %1512 = vmatpush1.msra.mxu0 0.0
    %1513 = vmatprep.subr.mxu0 0.0
    %1514 = vmatpush1.msra.mxu0 0.0
    %1515 = vmatprep.subr.mxu0 0.0
    %1516 = vmatpush1.msra.mxu0 0.0
    %1517 = vmatprep.subr.mxu0 0.0
    %1518 = vmatpush1.msra.mxu0 0.0
    %1519 = vmatprep.subr.mxu0 0.0
    %1520 = vmatpush1.msra.mxu0 0.0
    %1521 = vmatprep.mubr.f32.mxu0 0.0
    %1522 = vmatmul.mubr.f32.gmra.mrb[0].mxu0 %v1455
    %v1523 = vpop.f32.mrb[0].mxu0
    %v1524 = vadd.f32 %v1451, %v1523
    %v1525 = vpop.f32.mrb[0].mxu0
    %1526 = vdwg.mxu0
    %v1527 = vadd.f32 %v1524, %v420
    %v1528 = vtanh.pop %v1527
    %v1529 = vld [vmem:[#allocation2 + $0xc] sm:$0x3]
    %1530 = vmatprep.subr.mxu0 0.0
    %1531 = vmatpush1.msra.mxu0 %v184
    %1532 = vmatprep.subr.mxu0 0.0
    %1533 = vmatpush1.msra.mxu0 %v185
    %1534 = vmatprep.subr.mxu0 0.0
    %1535 = vmatpush1.msra.mxu0 %v186
    %1536 = vmatprep.subr.mxu0 0.0
    %1537 = vmatpush1.msra.mxu0 %v187
    %1538 = vmatprep.subr.mxu0 0.0
    %1539 = vmatpush1.msra.mxu0 0.0
    %1540 = vmatprep.subr.mxu0 0.0
    %1541 = vmatpush1.msra.mxu0 0.0
    %1542 = vmatprep.subr.mxu0 0.0
    %1543 = vmatpush1.msra.mxu0 0.0
    %1544 = vmatprep.subr.mxu0 0.0
    %1545 = vmatpush1.msra.mxu0 0.0
    %1546 = vmatprep.subr.mxu0 0.0
    %1547 = vmatpush1.msra.mxu0 0.0
    %1548 = vmatprep.subr.mxu0 0.0
    %1549 = vmatpush1.msra.mxu0 0.0
    %1550 = vmatprep.subr.mxu0 0.0
    %1551 = vmatpush1.msra.mxu0 0.0
    %1552 = vmatprep.subr.mxu0 0.0
    %1553 = vmatpush1.msra.mxu0 0.0
    %1554 = vmatprep.subr.mxu0 0.0
    %1555 = vmatpush1.msra.mxu0 0.0
    %1556 = vmatprep.subr.mxu0 0.0
    %1557 = vmatpush1.msra.mxu0 0.0
    %1558 = vmatprep.subr.mxu0 0.0
    %1559 = vmatpush1.msra.mxu0 0.0
    %1560 = vmatprep.subr.mxu0 0.0
    %1561 = vmatpush1.msra.mxu0 0.0
    %1562 = vmatprep.subr.mxu0 0.0
    %1563 = vmatpush1.msra.mxu0 0.0
    %1564 = vmatprep.subr.mxu0 0.0
    %1565 = vmatpush1.msra.mxu0 0.0
    %1566 = vmatprep.subr.mxu0 0.0
    %1567 = vmatpush1.msra.mxu0 0.0
    %1568 = vmatprep.subr.mxu0 0.0
    %1569 = vmatpush1.msra.mxu0 0.0
    %1570 = vmatprep.subr.mxu0 0.0
    %1571 = vmatpush1.msra.mxu0 0.0
    %1572 = vmatprep.subr.mxu0 0.0
    %1573 = vmatpush1.msra.mxu0 0.0
    %1574 = vmatprep.subr.mxu0 0.0
    %1575 = vmatpush1.msra.mxu0 0.0
    %1576 = vmatprep.subr.mxu0 0.0
    %1577 = vmatpush1.msra.mxu0 0.0
    %1578 = vmatprep.subr.mxu0 0.0
    %1579 = vmatpush1.msra.mxu0 0.0
    %1580 = vmatprep.subr.mxu0 0.0
    %1581 = vmatpush1.msra.mxu0 0.0
    %1582 = vmatprep.subr.mxu0 0.0
    %1583 = vmatpush1.msra.mxu0 0.0
    %1584 = vmatprep.subr.mxu0 0.0
    %1585 = vmatpush1.msra.mxu0 0.0
    %1586 = vmatprep.subr.mxu0 0.0
    %1587 = vmatpush1.msra.mxu0 0.0
    %1588 = vmatprep.subr.mxu0 0.0
    %1589 = vmatpush1.msra.mxu0 0.0
    %1590 = vmatprep.subr.mxu0 0.0
    %1591 = vmatpush1.msra.mxu0 0.0
    %1592 = vmatprep.subr.mxu0 0.0
    %1593 = vmatpush1.msra.mxu0 0.0
    %1594 = vmatprep.mubr.f32.mxu0 0.0
    %1595 = vmatmul.mubr.f32.gmra.mrb[0].mxu0 %v1455
    %v1596 = vpop.f32.mrb[0].mxu0
    %v1597 = vadd.f32 0.0, %v1596
    %v1598 = vpop.f32.mrb[0].mxu0
    %1599 = vdwg.mxu0
    %v1600 = vadd.f32 %v1529, %v1597
    %v1601 = vtanh.pop %v1600
    %v1603 = vsel %vm181, %v1528, 0
    %1605 = vmatprep.subr.mxu0 0.0
    %1606 = vmatpush1.msra.mxu0 %v188
    %1607 = vmatprep.subr.mxu0 0.0
    %1608 = vmatpush1.msra.mxu0 %v189
    %1609 = vmatprep.subr.mxu0 0.0
    %1610 = vmatpush1.msra.mxu0 %v190
    %1611 = vmatprep.subr.mxu0 0.0
    %1612 = vmatpush1.msra.mxu0 %v191
    %1613 = vmatprep.subr.mxu0 0.0
    %1614 = vmatpush1.msra.mxu0 0.0
    %1615 = vmatprep.subr.mxu0 0.0
    %1616 = vmatpush1.msra.mxu0 0.0
    %1617 = vmatprep.subr.mxu0 0.0
    %1618 = vmatpush1.msra.mxu0 0.0
    %1619 = vmatprep.subr.mxu0 0.0
    %1620 = vmatpush1.msra.mxu0 0.0
    %1621 = vmatprep.subr.mxu0 0.0
    %1622 = vmatpush1.msra.mxu0 0.0
    %1623 = vmatprep.subr.mxu0 0.0
    %1624 = vmatpush1.msra.mxu0 0.0
    %1625 = vmatprep.subr.mxu0 0.0
    %1626 = vmatpush1.msra.mxu0 0.0
    %1627 = vmatprep.subr.mxu0 0.0
    %1628 = vmatpush1.msra.mxu0 0.0
    %1629 = vmatprep.subr.mxu0 0.0
    %1630 = vmatpush1.msra.mxu0 0.0
    %1631 = vmatprep.subr.mxu0 0.0
    %1632 = vmatpush1.msra.mxu0 0.0
    %1633 = vmatprep.subr.mxu0 0.0
    %1634 = vmatpush1.msra.mxu0 0.0
    %1635 = vmatprep.subr.mxu0 0.0
    %1636 = vmatpush1.msra.mxu0 0.0
    %1637 = vmatprep.subr.mxu0 0.0
    %1638 = vmatpush1.msra.mxu0 0.0
    %1639 = vmatprep.subr.mxu0 0.0
    %1640 = vmatpush1.msra.mxu0 0.0
    %1641 = vmatprep.subr.mxu0 0.0
    %1642 = vmatpush1.msra.mxu0 0.0
    %1643 = vmatprep.subr.mxu0 0.0
    %1644 = vmatpush1.msra.mxu0 0.0
    %1645 = vmatprep.subr.mxu0 0.0
    %1646 = vmatpush1.msra.mxu0 0.0
    %1647 = vmatprep.subr.mxu0 0.0
    %1648 = vmatpush1.msra.mxu0 0.0
    %1649 = vmatprep.subr.mxu0 0.0
    %1650 = vmatpush1.msra.mxu0 0.0
    %1651 = vmatprep.subr.mxu0 0.0
    %1652 = vmatpush1.msra.mxu0 0.0
    %1653 = vmatprep.subr.mxu0 0.0
    %1654 = vmatpush1.msra.mxu0 0.0
    %1655 = vmatprep.subr.mxu0 0.0
    %1656 = vmatpush1.msra.mxu0 0.0
    %1657 = vmatprep.subr.mxu0 0.0
    %1658 = vmatpush1.msra.mxu0 0.0
    %1659 = vmatprep.subr.mxu0 0.0
    %1660 = vmatpush1.msra.mxu0 0.0
    %1661 = vmatprep.subr.mxu0 0.0
    %1662 = vmatpush1.msra.mxu0 0.0
    %1663 = vmatprep.subr.mxu0 0.0
    %1664 = vmatpush1.msra.mxu0 0.0
    %1665 = vmatprep.subr.mxu0 0.0
    %1666 = vmatpush1.msra.mxu0 0.0
    %1667 = vmatprep.subr.mxu0 0.0
    %1668 = vmatpush1.msra.mxu0 0.0
    %1669 = vmatprep.mubr.f32.mxu0 0.0
    %1670 = vmatmul.mubr.f32.gmra.mrb[0].mxu0 %v1603
    %v1671 = vpop.f32.mrb[0].mxu0
    %v1672 = vadd.f32 0.0, %v1671
    %v1673 = vpop.f32.mrb[0].mxu0
    %1674 = vdwg.mxu0
    %v1676 = vsel %vm181, %v1601, 0
    %1678 = vmatprep.subr.mxu0 0.0
    %1679 = vmatpush1.msra.mxu0 %v192
    %1680 = vmatprep.subr.mxu0 0.0
    %1681 = vmatpush1.msra.mxu0 %v193
    %1682 = vmatprep.subr.mxu0 0.0
    %1683 = vmatpush1.msra.mxu0 %v194
    %1684 = vmatprep.subr.mxu0 0.0
    %1685 = vmatpush1.msra.mxu0 %v195
    %1686 = vmatprep.subr.mxu0 0.0
    %1687 = vmatpush1.msra.mxu0 0.0
    %1688 = vmatprep.subr.mxu0 0.0
    %1689 = vmatpush1.msra.mxu0 0.0
    %1690 = vmatprep.subr.mxu0 0.0
    %1691 = vmatpush1.msra.mxu0 0.0
    %1692 = vmatprep.subr.mxu0 0.0
    %1693 = vmatpush1.msra.mxu0 0.0
    %1694 = vmatprep.subr.mxu0 0.0
    %1695 = vmatpush1.msra.mxu0 0.0
    %1696 = vmatprep.subr.mxu0 0.0
    %1697 = vmatpush1.msra.mxu0 0.0
    %1698 = vmatprep.subr.mxu0 0.0
    %1699 = vmatpush1.msra.mxu0 0.0
    %1700 = vmatprep.subr.mxu0 0.0
    %1701 = vmatpush1.msra.mxu0 0.0
    %1702 = vmatprep.subr.mxu0 0.0
    %1703 = vmatpush1.msra.mxu0 0.0
    %1704 = vmatprep.subr.mxu0 0.0
    %1705 = vmatpush1.msra.mxu0 0.0
    %1706 = vmatprep.subr.mxu0 0.0
    %1707 = vmatpush1.msra.mxu0 0.0
    %1708 = vmatprep.subr.mxu0 0.0
    %1709 = vmatpush1.msra.mxu0 0.0
    %1710 = vmatprep.subr.mxu0 0.0
    %1711 = vmatpush1.msra.mxu0 0.0
    %1712 = vmatprep.subr.mxu0 0.0
    %1713 = vmatpush1.msra.mxu0 0.0
    %1714 = vmatprep.subr.mxu0 0.0
    %1715 = vmatpush1.msra.mxu0 0.0
    %1716 = vmatprep.subr.mxu0 0.0
    %1717 = vmatpush1.msra.mxu0 0.0
    %1718 = vmatprep.subr.mxu0 0.0
    %1719 = vmatpush1.msra.mxu0 0.0
    %1720 = vmatprep.subr.mxu0 0.0
    %1721 = vmatpush1.msra.mxu0 0.0
    %1722 = vmatprep.subr.mxu0 0.0
    %1723 = vmatpush1.msra.mxu0 0.0
    %1724 = vmatprep.subr.mxu0 0.0
    %1725 = vmatpush1.msra.mxu0 0.0
    %1726 = vmatprep.subr.mxu0 0.0
    %1727 = vmatpush1.msra.mxu0 0.0
    %1728 = vmatprep.subr.mxu0 0.0
    %1729 = vmatpush1.msra.mxu0 0.0
    %1730 = vmatprep.subr.mxu0 0.0
    %1731 = vmatpush1.msra.mxu0 0.0
    %1732 = vmatprep.subr.mxu0 0.0
    %1733 = vmatpush1.msra.mxu0 0.0
    %1734 = vmatprep.subr.mxu0 0.0
    %1735 = vmatpush1.msra.mxu0 0.0
    %1736 = vmatprep.subr.mxu0 0.0
    %1737 = vmatpush1.msra.mxu0 0.0
    %1738 = vmatprep.subr.mxu0 0.0
    %1739 = vmatpush1.msra.mxu0 0.0
    %1740 = vmatprep.subr.mxu0 0.0
    %1741 = vmatpush1.msra.mxu0 0.0
    %1742 = vmatprep.mubr.f32.mxu0 0.0
    %1743 = vmatmul.mubr.f32.gmra.mrb[0].mxu0 %v1676
    %v1744 = vpop.f32.mrb[0].mxu0
    %v1745 = vadd.f32 %v1672, %v1744
    %v1746 = vpop.f32.mrb[0].mxu0
    %1747 = vdwg.mxu0
    %v1748 = vadd.f32 %v1745, %v420
    %v1749 = vtanh.pop %v1748
    %v1750 = vld [vmem:[#allocation2 + $0xe] sm:$0x3]
    %1751 = vmatprep.subr.mxu0 0.0
    %1752 = vmatpush1.msra.mxu0 %v184
    %1753 = vmatprep.subr.mxu0 0.0
    %1754 = vmatpush1.msra.mxu0 %v185
    %1755 = vmatprep.subr.mxu0 0.0
    %1756 = vmatpush1.msra.mxu0 %v186
    %1757 = vmatprep.subr.mxu0 0.0
    %1758 = vmatpush1.msra.mxu0 %v187
    %1759 = vmatprep.subr.mxu0 0.0
    %1760 = vmatpush1.msra.mxu0 0.0
    %1761 = vmatprep.subr.mxu0 0.0
    %1762 = vmatpush1.msra.mxu0 0.0
    %1763 = vmatprep.subr.mxu0 0.0
    %1764 = vmatpush1.msra.mxu0 0.0
    %1765 = vmatprep.subr.mxu0 0.0
    %1766 = vmatpush1.msra.mxu0 0.0
    %1767 = vmatprep.subr.mxu0 0.0
    %1768 = vmatpush1.msra.mxu0 0.0
    %1769 = vmatprep.subr.mxu0 0.0
    %1770 = vmatpush1.msra.mxu0 0.0
    %1771 = vmatprep.subr.mxu0 0.0
    %1772 = vmatpush1.msra.mxu0 0.0
    %1773 = vmatprep.subr.mxu0 0.0
    %1774 = vmatpush1.msra.mxu0 0.0
    %1775 = vmatprep.subr.mxu0 0.0
    %1776 = vmatpush1.msra.mxu0 0.0
    %1777 = vmatprep.subr.mxu0 0.0
    %1778 = vmatpush1.msra.mxu0 0.0
    %1779 = vmatprep.subr.mxu0 0.0
    %1780 = vmatpush1.msra.mxu0 0.0
    %1781 = vmatprep.subr.mxu0 0.0
    %1782 = vmatpush1.msra.mxu0 0.0
    %1783 = vmatprep.subr.mxu0 0.0
    %1784 = vmatpush1.msra.mxu0 0.0
    %1785 = vmatprep.subr.mxu0 0.0
    %1786 = vmatpush1.msra.mxu0 0.0
    %1787 = vmatprep.subr.mxu0 0.0
    %1788 = vmatpush1.msra.mxu0 0.0
    %1789 = vmatprep.subr.mxu0 0.0
    %1790 = vmatpush1.msra.mxu0 0.0
    %1791 = vmatprep.subr.mxu0 0.0
    %1792 = vmatpush1.msra.mxu0 0.0
    %1793 = vmatprep.subr.mxu0 0.0
    %1794 = vmatpush1.msra.mxu0 0.0
    %1795 = vmatprep.subr.mxu0 0.0
    %1796 = vmatpush1.msra.mxu0 0.0
    %1797 = vmatprep.subr.mxu0 0.0
    %1798 = vmatpush1.msra.mxu0 0.0
    %1799 = vmatprep.subr.mxu0 0.0
    %1800 = vmatpush1.msra.mxu0 0.0
    %1801 = vmatprep.subr.mxu0 0.0
    %1802 = vmatpush1.msra.mxu0 0.0
    %1803 = vmatprep.subr.mxu0 0.0
    %1804 = vmatpush1.msra.mxu0 0.0
    %1805 = vmatprep.subr.mxu0 0.0
    %1806 = vmatpush1.msra.mxu0 0.0
    %1807 = vmatprep.subr.mxu0 0.0
    %1808 = vmatpush1.msra.mxu0 0.0
    %1809 = vmatprep.subr.mxu0 0.0
    %1810 = vmatpush1.msra.mxu0 0.0
    %1811 = vmatprep.subr.mxu0 0.0
    %1812 = vmatpush1.msra.mxu0 0.0
    %1813 = vmatprep.subr.mxu0 0.0
    %1814 = vmatpush1.msra.mxu0 0.0
    %1815 = vmatprep.mubr.f32.mxu0 0.0
    %1816 = vmatmul.mubr.f32.gmra.mrb[0].mxu0 %v1676
    %v1817 = vpop.f32.mrb[0].mxu0
    %v1818 = vadd.f32 0.0, %v1817
    %v1819 = vpop.f32.mrb[0].mxu0
    %1820 = vdwg.mxu0
    %v1821 = vadd.f32 %v1750, %v1818
    %v1822 = vtanh.pop %v1821
    %v1824 = vsel %vm181, %v1749, 0
    %1826 = vmatprep.subr.mxu0 0.0
    %1827 = vmatpush1.msra.mxu0 %v188
    %1828 = vmatprep.subr.mxu0 0.0
    %1829 = vmatpush1.msra.mxu0 %v189
    %1830 = vmatprep.subr.mxu0 0.0
    %1831 = vmatpush1.msra.mxu0 %v190
    %1832 = vmatprep.subr.mxu0 0.0
    %1833 = vmatpush1.msra.mxu0 %v191
    %1834 = vmatprep.subr.mxu0 0.0
    %1835 = vmatpush1.msra.mxu0 0.0
    %1836 = vmatprep.subr.mxu0 0.0
    %1837 = vmatpush1.msra.mxu0 0.0
    %1838 = vmatprep.subr.mxu0 0.0
    %1839 = vmatpush1.msra.mxu0 0.0
    %1840 = vmatprep.subr.mxu0 0.0
    %1841 = vmatpush1.msra.mxu0 0.0
    %1842 = vmatprep.subr.mxu0 0.0
    %1843 = vmatpush1.msra.mxu0 0.0
    %1844 = vmatprep.subr.mxu0 0.0
    %1845 = vmatpush1.msra.mxu0 0.0
    %1846 = vmatprep.subr.mxu0 0.0
    %1847 = vmatpush1.msra.mxu0 0.0
    %1848 = vmatprep.subr.mxu0 0.0
    %1849 = vmatpush1.msra.mxu0 0.0
    %1850 = vmatprep.subr.mxu0 0.0
    %1851 = vmatpush1.msra.mxu0 0.0
    %1852 = vmatprep.subr.mxu0 0.0
    %1853 = vmatpush1.msra.mxu0 0.0
    %1854 = vmatprep.subr.mxu0 0.0
    %1855 = vmatpush1.msra.mxu0 0.0
    %1856 = vmatprep.subr.mxu0 0.0
    %1857 = vmatpush1.msra.mxu0 0.0
    %1858 = vmatprep.subr.mxu0 0.0
    %1859 = vmatpush1.msra.mxu0 0.0
    %1860 = vmatprep.subr.mxu0 0.0
    %1861 = vmatpush1.msra.mxu0 0.0
    %1862 = vmatprep.subr.mxu0 0.0
    %1863 = vmatpush1.msra.mxu0 0.0
    %1864 = vmatprep.subr.mxu0 0.0
    %1865 = vmatpush1.msra.mxu0 0.0
    %1866 = vmatprep.subr.mxu0 0.0
    %1867 = vmatpush1.msra.mxu0 0.0
    %1868 = vmatprep.subr.mxu0 0.0
    %1869 = vmatpush1.msra.mxu0 0.0
    %1870 = vmatprep.subr.mxu0 0.0
    %1871 = vmatpush1.msra.mxu0 0.0
    %1872 = vmatprep.subr.mxu0 0.0
    %1873 = vmatpush1.msra.mxu0 0.0
    %1874 = vmatprep.subr.mxu0 0.0
    %1875 = vmatpush1.msra.mxu0 0.0
    %1876 = vmatprep.subr.mxu0 0.0
    %1877 = vmatpush1.msra.mxu0 0.0
    %1878 = vmatprep.subr.mxu0 0.0
    %1879 = vmatpush1.msra.mxu0 0.0
    %1880 = vmatprep.subr.mxu0 0.0
    %1881 = vmatpush1.msra.mxu0 0.0
    %1882 = vmatprep.subr.mxu0 0.0
    %1883 = vmatpush1.msra.mxu0 0.0
    %1884 = vmatprep.subr.mxu0 0.0
    %1885 = vmatpush1.msra.mxu0 0.0
    %1886 = vmatprep.subr.mxu0 0.0
    %1887 = vmatpush1.msra.mxu0 0.0
    %1888 = vmatprep.subr.mxu0 0.0
    %1889 = vmatpush1.msra.mxu0 0.0
    %1890 = vmatprep.mubr.f32.mxu0 0.0
    %1891 = vmatmul.mubr.f32.gmra.mrb[0].mxu0 %v1824
    %v1892 = vpop.f32.mrb[0].mxu0
    %v1893 = vadd.f32 0.0, %v1892
    %v1894 = vpop.f32.mrb[0].mxu0
    %1895 = vdwg.mxu0
    %v1897 = vsel %vm181, %v1822, 0
    %1899 = vmatprep.subr.mxu0 0.0
    %1900 = vmatpush1.msra.mxu0 %v192
    %1901 = vmatprep.subr.mxu0 0.0
    %1902 = vmatpush1.msra.mxu0 %v193
    %1903 = vmatprep.subr.mxu0 0.0
    %1904 = vmatpush1.msra.mxu0 %v194
    %1905 = vmatprep.subr.mxu0 0.0
    %1906 = vmatpush1.msra.mxu0 %v195
    %1907 = vmatprep.subr.mxu0 0.0
    %1908 = vmatpush1.msra.mxu0 0.0
    %1909 = vmatprep.subr.mxu0 0.0
    %1910 = vmatpush1.msra.mxu0 0.0
    %1911 = vmatprep.subr.mxu0 0.0
    %1912 = vmatpush1.msra.mxu0 0.0
    %1913 = vmatprep.subr.mxu0 0.0
    %1914 = vmatpush1.msra.mxu0 0.0
    %1915 = vmatprep.subr.mxu0 0.0
    %1916 = vmatpush1.msra.mxu0 0.0
    %1917 = vmatprep.subr.mxu0 0.0
    %1918 = vmatpush1.msra.mxu0 0.0
    %1919 = vmatprep.subr.mxu0 0.0
    %1920 = vmatpush1.msra.mxu0 0.0
    %1921 = vmatprep.subr.mxu0 0.0
    %1922 = vmatpush1.msra.mxu0 0.0
    %1923 = vmatprep.subr.mxu0 0.0
    %1924 = vmatpush1.msra.mxu0 0.0
    %1925 = vmatprep.subr.mxu0 0.0
    %1926 = vmatpush1.msra.mxu0 0.0
    %1927 = vmatprep.subr.mxu0 0.0
    %1928 = vmatpush1.msra.mxu0 0.0
    %1929 = vmatprep.subr.mxu0 0.0
    %1930 = vmatpush1.msra.mxu0 0.0
    %1931 = vmatprep.subr.mxu0 0.0
    %1932 = vmatpush1.msra.mxu0 0.0
    %1933 = vmatprep.subr.mxu0 0.0
    %1934 = vmatpush1.msra.mxu0 0.0
    %1935 = vmatprep.subr.mxu0 0.0
    %1936 = vmatpush1.msra.mxu0 0.0
    %1937 = vmatprep.subr.mxu0 0.0
    %1938 = vmatpush1.msra.mxu0 0.0
    %1939 = vmatprep.subr.mxu0 0.0
    %1940 = vmatpush1.msra.mxu0 0.0
    %1941 = vmatprep.subr.mxu0 0.0
    %1942 = vmatpush1.msra.mxu0 0.0
    %1943 = vmatprep.subr.mxu0 0.0
    %1944 = vmatpush1.msra.mxu0 0.0
    %1945 = vmatprep.subr.mxu0 0.0
    %1946 = vmatpush1.msra.mxu0 0.0
    %1947 = vmatprep.subr.mxu0 0.0
    %1948 = vmatpush1.msra.mxu0 0.0
    %1949 = vmatprep.subr.mxu0 0.0
    %1950 = vmatpush1.msra.mxu0 0.0
    %1951 = vmatprep.subr.mxu0 0.0
    %1952 = vmatpush1.msra.mxu0 0.0
    %1953 = vmatprep.subr.mxu0 0.0
    %1954 = vmatpush1.msra.mxu0 0.0
    %1955 = vmatprep.subr.mxu0 0.0
    %1956 = vmatpush1.msra.mxu0 0.0
    %1957 = vmatprep.subr.mxu0 0.0
    %1958 = vmatpush1.msra.mxu0 0.0
    %1959 = vmatprep.subr.mxu0 0.0
    %1960 = vmatpush1.msra.mxu0 0.0
    %1961 = vmatprep.subr.mxu0 0.0
    %1962 = vmatpush1.msra.mxu0 0.0
    %1963 = vmatprep.mubr.f32.mxu0 0.0
    %1964 = vmatmul.mubr.f32.gmra.mrb[0].mxu0 %v1897
    %v1965 = vpop.f32.mrb[0].mxu0
    %v1966 = vadd.f32 %v1893, %v1965
    %v1967 = vpop.f32.mrb[0].mxu0
    %1968 = vdwg.mxu0
    %v1969 = vadd.f32 %v1966, %v420
    %v1970 = vtanh.pop %v1969
    %v1971 = vld [vmem:[%s7] sm:$0xff]
    %v1972 = vld [vmem:[%s7 + $0x8] sm:$0xff]
    %v1973 = vld [vmem:[%s7 + $0x10] sm:$0xff]
    %v1974 = vld [vmem:[%s7 + $0x18] sm:$0xff]
    %v1975 = vld [vmem:[%s8] sm:$0x1]
    %v1977 = vlaneseq
    %v1978 = vshrl.u32 %v1977, 7
    %v1979 = vsub.s32 0, %v1978
    %v1980 = vrot.slane %v1975, %v1979
    %v1983 = vsel %vm181, %v1970, 0
    %1985 = vmatprep.subr.mxu0 0.0
    %1986 = vmatpush1.msra.mxu0 %v1971
    %1987 = vmatprep.subr.mxu0 0.0
    %1988 = vmatpush1.msra.mxu0 %v1972
    %1989 = vmatprep.subr.mxu0 0.0
    %1990 = vmatpush1.msra.mxu0 %v1973
    %1991 = vmatprep.subr.mxu0 0.0
    %1992 = vmatpush1.msra.mxu0 %v1974
    %1993 = vmatprep.subr.mxu0 0.0
    %1994 = vmatpush1.msra.mxu0 0.0
    %1995 = vmatprep.subr.mxu0 0.0
    %1996 = vmatpush1.msra.mxu0 0.0
    %1997 = vmatprep.subr.mxu0 0.0
    %1998 = vmatpush1.msra.mxu0 0.0
    %1999 = vmatprep.subr.mxu0 0.0
    %2000 = vmatpush1.msra.mxu0 0.0
    %2001 = vmatprep.subr.mxu0 0.0
    %2002 = vmatpush1.msra.mxu0 0.0
    %2003 = vmatprep.subr.mxu0 0.0
    %2004 = vmatpush1.msra.mxu0 0.0
    %2005 = vmatprep.subr.mxu0 0.0
    %2006 = vmatpush1.msra.mxu0 0.0
    %2007 = vmatprep.subr.mxu0 0.0
    %2008 = vmatpush1.msra.mxu0 0.0
    %2009 = vmatprep.subr.mxu0 0.0
    %2010 = vmatpush1.msra.mxu0 0.0
    %2011 = vmatprep.subr.mxu0 0.0
    %2012 = vmatpush1.msra.mxu0 0.0
    %2013 = vmatprep.subr.mxu0 0.0
    %2014 = vmatpush1.msra.mxu0 0.0
    %2015 = vmatprep.subr.mxu0 0.0
    %2016 = vmatpush1.msra.mxu0 0.0
    %2017 = vmatprep.subr.mxu0 0.0
    %2018 = vmatpush1.msra.mxu0 0.0
    %2019 = vmatprep.subr.mxu0 0.0
    %2020 = vmatpush1.msra.mxu0 0.0
    %2021 = vmatprep.subr.mxu0 0.0
    %2022 = vmatpush1.msra.mxu0 0.0
    %2023 = vmatprep.subr.mxu0 0.0
    %2024 = vmatpush1.msra.mxu0 0.0
    %2025 = vmatprep.subr.mxu0 0.0
    %2026 = vmatpush1.msra.mxu0 0.0
    %2027 = vmatprep.subr.mxu0 0.0
    %2028 = vmatpush1.msra.mxu0 0.0
    %2029 = vmatprep.subr.mxu0 0.0
    %2030 = vmatpush1.msra.mxu0 0.0
    %2031 = vmatprep.subr.mxu0 0.0
    %2032 = vmatpush1.msra.mxu0 0.0
    %2033 = vmatprep.subr.mxu0 0.0
    %2034 = vmatpush1.msra.mxu0 0.0
    %2035 = vmatprep.subr.mxu0 0.0
    %2036 = vmatpush1.msra.mxu0 0.0
    %2037 = vmatprep.subr.mxu0 0.0
    %2038 = vmatpush1.msra.mxu0 0.0
    %2039 = vmatprep.subr.mxu0 0.0
    %2040 = vmatpush1.msra.mxu0 0.0
    %2041 = vmatprep.subr.mxu0 0.0
    %2042 = vmatpush1.msra.mxu0 0.0
    %2043 = vmatprep.subr.mxu0 0.0
    %2044 = vmatpush1.msra.mxu0 0.0
    %2045 = vmatprep.subr.mxu0 0.0
    %2046 = vmatpush1.msra.mxu0 0.0
    %2047 = vmatprep.subr.mxu0 0.0
    %2048 = vmatpush1.msra.mxu0 0.0
    %2049 = vmatprep.mubr.f32.mxu0 0.0
    %2050 = vmatmul.mubr.f32.gmra.mrb[0].mxu0 %v1983
    %v2051 = vpop.f32.mrb[0].mxu0
    %v2052 = vadd.f32 %v1980, %v2051
    %v2053 = vpop.f32.mrb[0].mxu0
    %2054 = vdwg.mxu0
    %vm2055 = vcmask 58368
    %2056 = vst.msk [vmem:[#allocation11] sm:$0x3] %vm2055, %v2052
    // Predicated region
    $region54: #{tpu_custom_call.1} parent=1 // pred_check
      _
    $region55: #{tpu_custom_call.1} parent=1 // pred_check_branch
      %2058 = sbr.rel (0) target = $region57
    $region56: #{tpu_custom_call.1} parent=1 // pred_region
      %s2060 = ssub.s32 32, 32
      %2061 = vsyncadd [#allocation5], %s2060
      %s2063 = sshll.u32 [#allocation11], 4
      %s2064 = int_to_ptr.vmem [resolvable:$true] %s2063
      %2066 = dma.vmem_to_hbm [thread:$0]  %s2064, 32, %s9, [#allocation5]
    $region57: #{tpu_custom_call.1} parent=1 // pred_fallthru
      _
    // Predicated region
    $region58: #{tpu_custom_call.1} parent=1 // pred_check
      _
    $region59: #{tpu_custom_call.1} parent=1 // pred_check_branch
      %2068 = sbr.rel (0) target = $region61
    $region60: #{tpu_custom_call.1} parent=1 // pred_region
      %2069 = dma.done [#allocation5], 32
    $region61: #{tpu_custom_call.1} parent=1 // pred_fallthru
      _
    %2070 = vsyncpa [#allocation4], 1
    %2071 = vsyncpa [#allocation7], 1
    %2072 = vsyncpa [#allocation10], 1
    %2073 = vsyncpa [#allocation5], 1

</llo_original>
